<compile_context>
chip_gen: v5e
topology: v5e:2x2
jax: 0.10.0
libtpu: 0.0.40
codegen_flags: <defaults>
</compile_context>

<pallas_src>
import functools

import jax
import jax.numpy as jnp
from jax.experimental import pallas as pl
from jax.experimental.pallas import tpu as pltpu

FP8_MAX = 448.0  # float8_e4m3fn max finite value


def _lm_head_body(x_ref, w_ref, scales_ref, bias_ref, out_ref, fuse_quant):
    a = x_ref[...]
    if fuse_quant:
        # quant_input: scale in f32 from the original precision, saturate to the
        # fp8_e4m3fn range (PyTorch quantizers clamp; a bare cast would yield NaN),
        # round to fp8, then hold in bf16 (exact) for the MXU.
        q = a.astype(jnp.float32) * scales_ref[0]
        q = jnp.clip(q, -FP8_MAX, FP8_MAX)
        a = q.astype(jnp.float8_e4m3fn).astype(jnp.bfloat16)
    w = w_ref[...]
    if w.dtype != jnp.bfloat16:
        # fp8 weight straight from HBM (1 B/elem); fp8 values are exact in bf16.
        # TODO(synk): on v7x feed both operands as native fp8 to the MXU (no upcast).
        w = w.astype(jnp.bfloat16)
    acc = jnp.dot(a, w, preferred_element_type=jnp.float32)   # MXU, f32 accumulation
    acc = acc * scales_ref[1]                                  # dequant in f32
    out = acc.astype(out_ref.dtype)
    if bias_ref is not None:
        out = out + bias_ref[...]                              # bf16 bias add
    out_ref[...] = out


def _make_kernel(fuse_quant, has_bias):
    if has_bias:
        def kernel(x_ref, w_ref, scales_ref, bias_ref, out_ref):
            _lm_head_body(x_ref, w_ref, scales_ref, bias_ref, out_ref, fuse_quant)
    else:
        def kernel(x_ref, w_ref, scales_ref, out_ref):
            _lm_head_body(x_ref, w_ref, scales_ref, None, out_ref, fuse_quant)
    return kernel


def _vmem_budget_bytes():
    phys = 64 * 1024 * 1024                       # conservative default (v7x per-TC)
    try:
        phys = int(pltpu.get_tpu_info().vmem_capacity_bytes)
    except Exception:
        pass
    return int(phys * 0.75)                       # ~48 MiB v7x, ~96 MiB v5e/v6e


def lm_head_linear_allreduce(
    x,             # [B, S, H] bf16/f32 high-precision input
    weight_q,      # [H_shard, N] float8_e4m3fn (already .t() like __init__)
    scale_input,   # scalar f32 (static calibration scale)
    scale_weight,  # scalar f32
    bias,          # [N] bf16/f32 or None
    *,
    rank: int,
    world_size: int,
    impl: str = "fp8",     # "fp8": fp8 weight + fused in-kernel quant; "bf16": fallback
    tm: int = 256,
    tn_max: int = 4096,
):
    B, S, H = x.shape
    assert H % world_size == 0, "world_size must divide input.shape[-1]"
    shard = H // world_size
    K, N = weight_q.shape
    assert K == shard
    M = B * S

    scale_input = jnp.asarray(scale_input, jnp.float32)
    scale_weight = jnp.asarray(scale_weight, jnp.float32)
    inv_scale_in = 1.0 / scale_input
    scales = jnp.stack([inv_scale_in, scale_input * scale_weight])  # (2,) f32 -> SMEM

    fuse_quant = impl == "fp8"
    if fuse_quant:
        w_arr = weight_q                              # fp8: 1 B/elem HBM->VMEM stream
        if K == H or K % 128 == 0:
            # Shard selection via BlockSpec index_map: zero-copy, no glue pass over x.
            a2d = x.reshape(M, H)
            a_col = rank
        else:
            a2d = jax.lax.slice_in_dim(x, rank * shard, (rank + 1) * shard,
                                       axis=2).reshape(M, K)
            a_col = 0
    else:
        # Fallback for Mosaic lowerings without in-kernel fp8 casts: quantize the
        # shard in XLA glue (from the original precision, saturating) and hold the
        # fp8 values in bf16; weight likewise held in bf16.
        x_shard = jax.lax.slice_in_dim(x, rank * shard, (rank + 1) * shard, axis=2)
        q = jnp.clip(x_shard.astype(jnp.float32) * inv_scale_in, -FP8_MAX, FP8_MAX)
        a2d = q.astype(jnp.float8_e4m3fn).astype(jnp.bfloat16).reshape(M, K)
        a_col = 0
        w_arr = weight_q.astype(jnp.bfloat16)

    a_bytes = a2d.dtype.itemsize
    w_bytes = w_arr.dtype.itemsize

    # ---- tile sizes under an explicit VMEM budget ----
    tm_e = min(tm, M)
    if tm_e < M:
        tm_e = max(8, (tm_e // 8) * 8)
    budget = _vmem_budget_bytes()

    def live_bytes(tn_):
        # double-buffered activation/weight/output tiles + bias + slack
        return 2 * (tm_e * K * a_bytes + K * tn_ * w_bytes + tm_e * tn_ * 2) \
               + 4 * tn_ + (1 << 20)

    tn_e = min(128, N)
    for cand in (4096, 2048, 1024, 512, 256, 128):
        if cand > tn_max:
            continue
        c = min(cand, N)
        if c < N and c % 128 != 0:
            continue
        if live_bytes(c) <= budget:
            tn_e = c
            break
    # TODO(synk): if even tn=128 exceeds the budget (very large K), add a K grid
    # axis ("arbitrary") with an f32 accumulator scratch instead of un-tiled K.

    n_tiles = pl.cdiv(N, tn_e)
    m_tiles = pl.cdiv(M, tm_e)

    # ---- adaptive grid order: minimize HBM re-fetch traffic ----
    traffic_n_outer = M * K * a_bytes * n_tiles + K * N * w_bytes   # weight streamed once
    traffic_m_outer = M * K * a_bytes + K * N * w_bytes * m_tiles   # activation once
    n_outer = traffic_n_outer <= traffic_m_outer

    if n_outer:
        grid = (n_tiles, m_tiles)
        x_map = lambda nj, mi: (mi, a_col)
        w_map = lambda nj, mi: (0, nj)
        b_map = lambda nj, mi: (0, nj)
        o_map = lambda nj, mi: (mi, nj)
        # N (vocab) outer + parallel: v7x megacore splits the weight stream across
        # the two TensorCores; M inner so the resident (K, tn) weight tile is reused.
        dims = ("parallel", "arbitrary")
        traffic = traffic_n_outer
    else:
        grid = (m_tiles, n_tiles)
        x_map = lambda mi, nj: (mi, a_col)
        w_map = lambda mi, nj: (0, nj)
        b_map = lambda mi, nj: (0, nj)
        o_map = lambda mi, nj: (mi, nj)
        dims = ("parallel", "parallel")
        traffic = traffic_m_outer

    has_bias = bias is not None
    in_specs = [
        pl.BlockSpec((tm_e, K), x_map),          # activation tile (rank shard)
        pl.BlockSpec((K, tn_e), w_map),          # weight tile (fp8 or bf16)
        pl.BlockSpec(memory_space=pltpu.SMEM),   # scales (2,) f32
    ]
    args = [a2d, w_arr, scales]
    if has_bias:
        in_specs.append(pl.BlockSpec((1, tn_e), b_map))
        args.append(bias.astype(jnp.bfloat16).reshape(1, N))

    bytes_accessed = int(traffic + M * N * 2 + (2 * N if has_bias else 0))

    out2d = pl.pallas_call(
        _make_kernel(fuse_quant, has_bias),
        out_shape=jax.ShapeDtypeStruct((M, N), jnp.bfloat16),
        grid=grid,
        in_specs=in_specs,
        out_specs=pl.BlockSpec((tm_e, tn_e), o_map),
        compiler_params=pltpu.CompilerParams(
            dimension_semantics=dims,
            vmem_limit_bytes=budget),
        cost_estimate=pl.CostEstimate(
            flops=2 * M * K * N,
            transcendentals=0,
            bytes_accessed=bytes_accessed),
    )(*args)

    # TODO(synk): mp_group all-reduce (deepspeed dist.inference_all_reduce) is a
    # cross-device collective; single-device run here corresponds to mp_group=None.
    return out2d.reshape(B, S, N)


def _reference(x, weight_q, scale_input, scale_weight, bias, *, rank, world_size):
    B, S, H = x.shape
    shard = H // world_size
    x_shard = x[:, :, rank * shard:(rank + 1) * shard].astype(jnp.float32)
    q = jnp.clip(x_shard * (1.0 / scale_input), -FP8_MAX, FP8_MAX)
    q = q.astype(jnp.float8_e4m3fn).astype(jnp.float32)
    out = (q.reshape(-1, shard) @ weight_q.astype(jnp.float32)) * (scale_input * scale_weight)
    out = out.astype(jnp.bfloat16)
    if bias is not None:
        out = out + bias.astype(jnp.bfloat16)
    return out.reshape(B, S, -1)


if __name__ == "__main__":
    key = jax.random.PRNGKey(0)
    k_x, k_w, k_b, k_x2, k_w2 = jax.random.split(key, 5)

    world_size, rank = 2, 0

    # ---- case 1: decode-ish (small M), with bias.
    #      Exercises the (N outer, M inner) order on a (4, 2) grid (tm=8, tn=256). ----
    B, S, H = 2, 8, 256
    shard = H // world_size      # 128
    N = 1024                     # lm-head vocab slice

    x = jax.random.normal(k_x, (B, S, H), dtype=jnp.float32).astype(jnp.bfloat16)

    w_fp = jax.random.normal(k_w, (N, shard), dtype=jnp.float32) * 0.1  # [out, in_shard]
    scale_weight = jnp.max(jnp.abs(w_fp)) / FP8_MAX
    w_q = jnp.clip(w_fp / scale_weight, -FP8_MAX, FP8_MAX).astype(jnp.float8_e4m3fn)
    weight_q = w_q.T             # __init__ does weight.t().contiguous() -> [shard, N]

    # scale_input is a static calibration constant in the real module.
    x_shard0 = x[:, :, rank * shard:(rank + 1) * shard].astype(jnp.float32)
    scale_input = jnp.max(jnp.abs(x_shard0)) / FP8_MAX

    bias = (jax.random.normal(k_b, (N,), dtype=jnp.float32) * 0.01).astype(jnp.bfloat16)

    def run(impl, xx, ww, s_in, s_w, bb, tm_, tn_):
        fn = jax.jit(functools.partial(
            lm_head_linear_allreduce, rank=rank, world_size=world_size,
            impl=impl, tm=tm_, tn_max=tn_))
        return jax.block_until_ready(fn(xx, ww, s_in, s_w, bb))

    impl = "fp8"
    try:
        out = run("fp8", x, weight_q, scale_input, scale_weight, bias, 8, 256)
    except Exception:
        # Mosaic on this TPU generation lacks in-kernel fp8 casts; fall back to the
        # glue-quantized bf16 path.
        impl = "bf16"
        out = run("bf16", x, weight_q, scale_input, scale_weight, bias, 8, 256)

    ref = _reference(x, weight_q, scale_input, scale_weight, bias,
                     rank=rank, world_size=world_size)
    assert out.shape == (B, S, N) and out.dtype == jnp.bfloat16
    assert jnp.allclose(out.astype(jnp.float32), ref.astype(jnp.float32),
                        atol=2e-2, rtol=2e-2)

    # ---- case 2: prefill-ish (large M), no bias.
    #      Exercises the (M outer, N inner) order and the static bias skip. ----
    B2, S2, N2 = 2, 256, 256
    x2 = jax.random.normal(k_x2, (B2, S2, H), dtype=jnp.float32).astype(jnp.bfloat16)
    w2_fp = jax.random.normal(k_w2, (N2, shard), dtype=jnp.float32) * 0.1
    scale_weight2 = jnp.max(jnp.abs(w2_fp)) / FP8_MAX
    weight_q2 = jnp.clip(w2_fp / scale_weight2, -FP8_MAX, FP8_MAX).astype(
        jnp.float8_e4m3fn).T
    x2_shard0 = x2[:, :, rank * shard:(rank + 1) * shard].astype(jnp.float32)
    scale_input2 = jnp.max(jnp.abs(x2_shard0)) / FP8_MAX

    out2 = run(impl, x2, weight_q2, scale_input2, scale_weight2, None, 256, 128)
    ref2 = _reference(x2, weight_q2, scale_input2, scale_weight2, None,
                      rank=rank, world_size=world_size)
    assert out2.shape == (B2, S2, N2) and out2.dtype == jnp.bfloat16
    assert jnp.allclose(out2.astype(jnp.float32), ref2.astype(jnp.float32),
                        atol=2e-2, rtol=2e-2)

    print("KERNEL_OK")
</pallas_src>

<mosaic_0001>
module attributes {stable_mosaic.version = 11 : i64} {
  func.func @kernel(%arg0: i32, %arg1: i32, %arg2: memref<8x128xbf16, #tpu.memory_space<vmem>>, %arg3: memref<128x256xf8E4M3FN, #tpu.memory_space<vmem>>, %arg4: memref<2xf32, #tpu.memory_space<smem>>, %arg5: memref<1x256xbf16, #tpu.memory_space<vmem>>, %arg6: memref<8x256xbf16, #tpu.memory_space<vmem>>) attributes {dimension_semantics = [#tpu.dimension_semantics<parallel>, #tpu.dimension_semantics<arbitrary>], iteration_bounds = array<i64: 4, 2>, scalar_prefetch = 0 : i64, scratch_operands = 0 : i64, tpu.core_type = #tpu.core_type<tc>, window_params = [{transform_indices = @transform_0, window_bounds = array<i64: 8, 128>}, {transform_indices = @transform_1, window_bounds = array<i64: 128, 256>}, {transform_indices = @transform_2, window_bounds = array<i64: 2>}, {transform_indices = @transform_3, window_bounds = array<i64: 1, 256>}, {transform_indices = @transform_4, window_bounds = array<i64: 8, 256>}]} {
    %c0 = arith.constant 0 : index
    %c0_0 = arith.constant 0 : index
    %0 = vector.load %arg2[%c0, %c0_0] : memref<8x128xbf16, #tpu.memory_space<vmem>>, vector<8x128xbf16>
    %1 = arith.extf %0 : vector<8x128xbf16> to vector<8x128xf32>
    %c0_1 = arith.constant 0 : index
    %2 = memref.load %arg4[%c0_1] : memref<2xf32, #tpu.memory_space<smem>>
    %3 = vector.broadcast %2 : f32 to vector<8x128xf32>
    %4 = arith.mulf %1, %3 : vector<8x128xf32>
    %cst = arith.constant -4.480000e+02 : f32
    %cst_2 = arith.constant 4.480000e+02 : f32
    %5 = vector.broadcast %cst : f32 to vector<8x128xf32>
    %6 = arith.maximumf %5, %4 : vector<8x128xf32>
    %7 = vector.broadcast %cst_2 : f32 to vector<8x128xf32>
    %8 = arith.minimumf %7, %6 : vector<8x128xf32>
    %9 = arith.truncf %8 : vector<8x128xf32> to vector<8x128xf8E4M3FN>
    %10 = arith.extf %9 : vector<8x128xf8E4M3FN> to vector<8x128xbf16>
    %c0_3 = arith.constant 0 : index
    %c0_4 = arith.constant 0 : index
    %11 = vector.load %arg3[%c0_3, %c0_4] : memref<128x256xf8E4M3FN, #tpu.memory_space<vmem>>, vector<128x256xf8E4M3FN>
    %12 = arith.extf %11 : vector<128x256xf8E4M3FN> to vector<128x256xbf16>
    %cst_5 = arith.constant dense<0.000000e+00> : vector<8x256xf32>
    %13 = tpu.matmul %10, %12, %cst_5 {dimension_numbers = #tpu.dot_dimension_numbers<[1], [0], [0], [1], [0, 0, 1, 1], [], []>} : vector<8x128xbf16>, vector<128x256xbf16>, vector<8x256xf32> -> vector<8x256xf32>
    %c1 = arith.constant 1 : index
    %14 = memref.load %arg4[%c1] : memref<2xf32, #tpu.memory_space<smem>>
    %15 = vector.broadcast %14 : f32 to vector<8x256xf32>
    %16 = arith.mulf %13, %15 : vector<8x256xf32>
    %17 = arith.truncf %16 : vector<8x256xf32> to vector<8x256xbf16>
    %c0_6 = arith.constant 0 : index
    %c0_7 = arith.constant 0 : index
    %18 = vector.load %arg5[%c0_6, %c0_7] : memref<1x256xbf16, #tpu.memory_space<vmem>>, vector<1x256xbf16>
    %19 = vector.broadcast %18 : vector<1x256xbf16> to vector<8x256xbf16>
    %20 = arith.addf %17, %19 : vector<8x256xbf16>
    %c0_8 = arith.constant 0 : index
    %c0_9 = arith.constant 0 : index
    %21 = vector.load %arg6[%c0_8, %c0_9] : memref<8x256xbf16, #tpu.memory_space<vmem>>, vector<8x256xbf16>
    tpu.vector_store %arg6[%c0_8, %c0_9], %20 {strides = array<i32>} : memref<8x256xbf16, #tpu.memory_space<vmem>>, vector<8x256xbf16>,
    return
  }
  func.func @transform_0(%arg0: i32, %arg1: i32) -> (i32, i32) {
    %c0_i32 = arith.constant 0 : i32
    %c0_i32_0 = arith.constant 0 : i32
    return %arg1, %c0_i32 : i32, i32
  }
  func.func @transform_1(%arg0: i32, %arg1: i32) -> (i32, i32) {
    %c0_i32 = arith.constant 0 : i32
    %c0_i32_0 = arith.constant 0 : i32
    return %c0_i32, %arg0 : i32, i32
  }
  func.func @transform_2(%arg0: i32, %arg1: i32) -> i32 {
    %c0_i32 = arith.constant 0 : i32
    %c0_i32_0 = arith.constant 0 : i32
    return %c0_i32 : i32
  }
  func.func @transform_3(%arg0: i32, %arg1: i32) -> (i32, i32) {
    %c0_i32 = arith.constant 0 : i32
    %c0_i32_0 = arith.constant 0 : i32
    return %c0_i32, %arg0 : i32, i32
  }
  func.func @transform_4(%arg0: i32, %arg1: i32) -> (i32, i32) {
    %c0_i32 = arith.constant 0 : i32
    return %arg1, %arg0 : i32, i32
  }
}

module attributes {stable_mosaic.version = 11 : i64} {
  func.func @kernel(%arg0: i32, %arg1: i32, %arg2: memref<8x128xbf16, #tpu.memory_space<vmem>>, %arg3: memref<128x256xbf16, #tpu.memory_space<vmem>>, %arg4: memref<2xf32, #tpu.memory_space<smem>>, %arg5: memref<1x256xbf16, #tpu.memory_space<vmem>>, %arg6: memref<8x256xbf16, #tpu.memory_space<vmem>>) attributes {dimension_semantics = [#tpu.dimension_semantics<parallel>, #tpu.dimension_semantics<arbitrary>], iteration_bounds = array<i64: 4, 2>, scalar_prefetch = 0 : i64, scratch_operands = 0 : i64, tpu.core_type = #tpu.core_type<tc>, window_params = [{transform_indices = @transform_0, window_bounds = array<i64: 8, 128>}, {transform_indices = @transform_1, window_bounds = array<i64: 128, 256>}, {transform_indices = @transform_2, window_bounds = array<i64: 2>}, {transform_indices = @transform_3, window_bounds = array<i64: 1, 256>}, {transform_indices = @transform_4, window_bounds = array<i64: 8, 256>}]} {
    %c0 = arith.constant 0 : index
    %c0_0 = arith.constant 0 : index
    %0 = vector.load %arg2[%c0, %c0_0] : memref<8x128xbf16, #tpu.memory_space<vmem>>, vector<8x128xbf16>
    %c0_1 = arith.constant 0 : index
    %c0_2 = arith.constant 0 : index
    %1 = vector.load %arg3[%c0_1, %c0_2] : memref<128x256xbf16, #tpu.memory_space<vmem>>, vector<128x256xbf16>
    %cst = arith.constant dense<0.000000e+00> : vector<8x256xf32>
    %2 = tpu.matmul %0, %1, %cst {dimension_numbers = #tpu.dot_dimension_numbers<[1], [0], [0], [1], [0, 0, 1, 1], [], []>} : vector<8x128xbf16>, vector<128x256xbf16>, vector<8x256xf32> -> vector<8x256xf32>
    %c1 = arith.constant 1 : index
    %3 = memref.load %arg4[%c1] : memref<2xf32, #tpu.memory_space<smem>>
    %4 = vector.broadcast %3 : f32 to vector<8x256xf32>
    %5 = arith.mulf %2, %4 : vector<8x256xf32>
    %6 = arith.truncf %5 : vector<8x256xf32> to vector<8x256xbf16>
    %c0_3 = arith.constant 0 : index
    %c0_4 = arith.constant 0 : index
    %7 = vector.load %arg5[%c0_3, %c0_4] : memref<1x256xbf16, #tpu.memory_space<vmem>>, vector<1x256xbf16>
    %8 = vector.broadcast %7 : vector<1x256xbf16> to vector<8x256xbf16>
    %9 = arith.addf %6, %8 : vector<8x256xbf16>
    %c0_5 = arith.constant 0 : index
    %c0_6 = arith.constant 0 : index
    %10 = vector.load %arg6[%c0_5, %c0_6] : memref<8x256xbf16, #tpu.memory_space<vmem>>, vector<8x256xbf16>
    tpu.vector_store %arg6[%c0_5, %c0_6], %9 {strides = array<i32>} : memref<8x256xbf16, #tpu.memory_space<vmem>>, vector<8x256xbf16>,
    return
  }
  func.func @transform_0(%arg0: i32, %arg1: i32) -> (i32, i32) {
    %c0_i32 = arith.constant 0 : i32
    %c0_i32_0 = arith.constant 0 : i32
    return %arg1, %c0_i32 : i32, i32
  }
  func.func @transform_1(%arg0: i32, %arg1: i32) -> (i32, i32) {
    %c0_i32 = arith.constant 0 : i32
    %c0_i32_0 = arith.constant 0 : i32
    return %c0_i32, %arg0 : i32, i32
  }
  func.func @transform_2(%arg0: i32, %arg1: i32) -> i32 {
    %c0_i32 = arith.constant 0 : i32
    %c0_i32_0 = arith.constant 0 : i32
    return %c0_i32 : i32
  }
  func.func @transform_3(%arg0: i32, %arg1: i32) -> (i32, i32) {
    %c0_i32 = arith.constant 0 : i32
    %c0_i32_0 = arith.constant 0 : i32
    return %c0_i32, %arg0 : i32, i32
  }
  func.func @transform_4(%arg0: i32, %arg1: i32) -> (i32, i32) {
    %c0_i32 = arith.constant 0 : i32
    return %arg1, %arg0 : i32, i32
  }
}

</mosaic_0001>

<llo_original>
// kernel: lm_head_linear_allreduce.1
$region0: #{lm_head_linear_allreduce.1}
  #allocation0 [shape = 'u32[]', space=smem, size = 0x4, offset = 0x4, fixed_abs, tag = 'smem constant byte address 0x4 - core index']
  #allocation1 [shape = 'u32[72,128]{1,0:T(1,128)}', space=vmem, size = 0x9000, scoped, tag = 'internal scratch']
  %s0 = inlined_call_operand.vmem [shape: bf16[16,256], index: 0, kind: input, shape index: {}]
  %s1 = inlined_call_operand.hbm [shape: f8e4m3fn[128,1024], index: 1, kind: input, shape index: {}]
  %s2 = inlined_call_operand.vmem [shape: f32[2], index: 2, kind: input, shape index: {}]
  %s3 = inlined_call_operand.vmem [shape: bf16[1,1024], index: 3, kind: input, shape index: {}]
  %s4 = inlined_call_operand.hbm [shape: bf16[16,1024], index: 4, kind: output, shape index: {}]
  %s5 = sld [smem:[#allocation0]]
  $region90: #{lm_head_linear_allreduce.1} parent=0
    _
  %s7 = ssub.s32 1, %s5
  %s8 = scalar_select 0, %s7, %s5
  $region1: #{lm_head_linear_allreduce.1} parent=0
    #allocation2 [shape = 'u8[65536]{0}', space=vmem, size = 0x10000, scoped, tag = 'input window, operand 1']
    #allocation3 [shape = 's32[2]{0}', space=sflag, size = 0x8, scoped, tag = 'scoped memory for lm_head_linear_allreduce.1']
    #allocation4 [shape = 's32[2]{0}', space=sflag, size = 0x8, scoped, tag = 'scoped memory for lm_head_linear_allreduce.1']
    #allocation5 [shape = 's32[2]{0}', space=sflag, size = 0x8, scoped, tag = 'scoped memory for lm_head_linear_allreduce.1']
    #allocation6 [shape = 'u8[512]{0}', space=smem, size = 0x200, scoped, tag = 'input window, operand 2, single buffered']
    #allocation7 [shape = 'u8[8192]{0}', space=vmem, size = 0x2000, scoped, tag = 'output window, operand 0']
    %9 = vsyncpa [#allocation3], 0
    %s10 = scalar_lea.sflag [#allocation3], 1
    %11 = vsyncpa %s10, 0
    %12 = vsyncpa [#allocation5], 0
    %13 = vsyncpa [#allocation4], 0
    %s14 = scalar_lea.sflag [#allocation4], 1
    %15 = vsyncpa %s14, 0
    loop: start=0, step=1, limit=10
    $region2: #{lm_head_linear_allreduce.1} parent=1 // loop_pre_header
      _
    $region3: #{lm_head_linear_allreduce.1} parent=1 // loop_header
      %s17 = sphi 0, %s21
      %p18 = scmp.ge.s32.totalorder %s17, 10
      %s24 = sphi 0, %s36
      %s25 = sphi 0, %s32
      %s26 = sphi 0, %s24
      %s27 = sphi 0, %s25
      %s28 = sphi 0, %s26
      %s29 = sphi 0, %s27
      %s39 = sphi 0, %s41
      %s42 = sphi 0, %s39
      %s43 = sphi 0, %s42
      %s59 = sphi 0, %s43
      %s65 = sphi 0, %s67
      %s68 = sphi 0, %s65
      %s69 = sphi 0, %s68
      %s85 = sphi 0, %s69
      %s89 = sphi 0, %s89
      %s91 = sphi 0, %s89
      %s92 = sphi 0, %s91
      %s106 = sphi 0, %s92
      %s112 = sphi 0, %s114
      %s115 = sphi 0, %s112
      %s116 = sphi 0, %s115
      %s132 = sphi 0, %s116
      %s140 = sphi 0, %s142
      %s143 = sphi 0, %s140
      %s144 = sphi 0, %s143
      %s160 = sphi 0, %s144
    $region4: #{lm_head_linear_allreduce.1} parent=1 // loop_header_branch
      %20 = sbr.rel (%p18) target = $region8
    $region5: #{lm_head_linear_allreduce.1} parent=1 // loop_body
      %s22 = ssub.s32 %s17, 1
      %s23 = ssub.s32 %s17, 2
      %s30 = sadd.s32 1, %s25
      %p31 = scmp.ge.s32.totalorder %s30, 2
      %s32 = scalar_select %p31, 0, %s30
      %s33 = sadd.s32 1, %s24
      %s34 = scalar_select %p31, %s33, %s24
      %p35 = scmp.ge.s32.totalorder %s34, 4
      %s36 = scalar_select %p35, 0, %s34
      %s37 = ssub.s32 %s25, %s32
      %p38 = scmp.eq.s32.totalorder %s37, 0
      %s40 = sadd.s32 %s39, 1
      %s41 = scalar_select %p38, %s39, %s40
      %p44 = pneg %p38
      %p45 = scmp.eq.s32.totalorder %s17, 7
      %p46 = por %p44, %p45
      %p47 = scmp.ne.s32.totalorder %s39, %s42
      %p48 = scmp.eq.s32.totalorder %s17, 0
      %p49 = por %p47, %p48
      %p50 = scmp.ne.s32.totalorder %s39, %s42
      %p51 = scmp.eq.s32.totalorder %s22, 7
      %p52 = por %p50, %p51
      %p53 = scmp.ne.s32.totalorder %s42, %s43
      %p54 = scmp.eq.s32.totalorder %s22, 0
      %p55 = por %p53, %p54
      %p56 = scmp.ne.s32.totalorder %s42, %s43
      %p57 = scmp.eq.s32.totalorder %s23, 7
      %p58 = por %p56, %p57
      %p60 = scmp.ne.s32.totalorder %s43, %s59
      %p61 = scmp.eq.s32.totalorder %s23, 0
      %p62 = por %p60, %p61
      %s63 = ssub.s32 %s24, %s36
      %p64 = scmp.eq.s32.totalorder %s63, 0
      %s66 = sadd.s32 %s65, 1
      %s67 = scalar_select %p64, %s65, %s66
      %p70 = pneg %p64
      %p71 = scmp.eq.s32.totalorder %s17, 7
      %p72 = por %p70, %p71
      %p73 = scmp.ne.s32.totalorder %s65, %s68
      %p74 = scmp.eq.s32.totalorder %s17, 0
      %p75 = por %p73, %p74
      %p76 = scmp.ne.s32.totalorder %s65, %s68
      %p77 = scmp.eq.s32.totalorder %s22, 7
      %p78 = por %p76, %p77
      %p79 = scmp.ne.s32.totalorder %s68, %s69
      %p80 = scmp.eq.s32.totalorder %s22, 0
      %p81 = por %p79, %p80
      %p82 = scmp.ne.s32.totalorder %s68, %s69
      %p83 = scmp.eq.s32.totalorder %s23, 7
      %p84 = por %p82, %p83
      %p86 = scmp.ne.s32.totalorder %s69, %s85
      %p87 = scmp.eq.s32.totalorder %s23, 0
      %p88 = por %p86, %p87
      %s90 = sadd.s32 %s89, 1
      %p93 = scmp.eq.s32.totalorder %s17, 7
      %p94 = scmp.ne.s32.totalorder %s89, %s91
      %p95 = scmp.eq.s32.totalorder %s17, 0
      %p96 = por %p94, %p95
      %p97 = scmp.ne.s32.totalorder %s89, %s91
      %p98 = scmp.eq.s32.totalorder %s22, 7
      %p99 = por %p97, %p98
      %p100 = scmp.ne.s32.totalorder %s91, %s92
      %p101 = scmp.eq.s32.totalorder %s22, 0
      %p102 = por %p100, %p101
      %p103 = scmp.ne.s32.totalorder %s91, %s92
      %p104 = scmp.eq.s32.totalorder %s23, 7
      %p105 = por %p103, %p104
      %p107 = scmp.ne.s32.totalorder %s92, %s106
      %p108 = scmp.eq.s32.totalorder %s23, 0
      %p109 = por %p107, %p108
      %s110 = ssub.s32 %s24, %s36
      %p111 = scmp.eq.s32.totalorder %s110, 0
      %s113 = sadd.s32 %s112, 1
      %s114 = scalar_select %p111, %s112, %s113
      %p117 = pneg %p111
      %p118 = scmp.eq.s32.totalorder %s17, 7
      %p119 = por %p117, %p118
      %p120 = scmp.ne.s32.totalorder %s112, %s115
      %p121 = scmp.eq.s32.totalorder %s17, 0
      %p122 = por %p120, %p121
      %p123 = scmp.ne.s32.totalorder %s112, %s115
      %p124 = scmp.eq.s32.totalorder %s22, 7
      %p125 = por %p123, %p124
      %p126 = scmp.ne.s32.totalorder %s115, %s116
      %p127 = scmp.eq.s32.totalorder %s22, 0
      %p128 = por %p126, %p127
      %p129 = scmp.ne.s32.totalorder %s115, %s116
      %p130 = scmp.eq.s32.totalorder %s23, 7
      %p131 = por %p129, %p130
      %p133 = scmp.ne.s32.totalorder %s116, %s132
      %p134 = scmp.eq.s32.totalorder %s23, 0
      %p135 = por %p133, %p134
      %s136 = ssub.s32 %s25, %s32
      %s137 = ssub.s32 %s24, %s36
      %s138 = sor.u32 %s136, %s137
      %p139 = scmp.eq.s32.totalorder %s138, 0
      %s141 = sadd.s32 %s140, 1
      %s142 = scalar_select %p139, %s140, %s141
      %p145 = pneg %p139
      %p146 = scmp.eq.s32.totalorder %s17, 7
      %p147 = por %p145, %p146
      %p148 = scmp.ne.s32.totalorder %s140, %s143
      %p149 = scmp.eq.s32.totalorder %s17, 0
      %p150 = por %p148, %p149
      %p151 = scmp.ne.s32.totalorder %s140, %s143
      %p152 = scmp.eq.s32.totalorder %s22, 7
      %p153 = por %p151, %p152
      %p154 = scmp.ne.s32.totalorder %s143, %s144
      %p155 = scmp.eq.s32.totalorder %s22, 0
      %p156 = por %p154, %p155
      %p157 = scmp.ne.s32.totalorder %s143, %s144
      %p158 = scmp.eq.s32.totalorder %s23, 7
      %p159 = por %p157, %p158
      %p161 = scmp.ne.s32.totalorder %s144, %s160
      %p162 = scmp.eq.s32.totalorder %s23, 0
      %p163 = por %p161, %p162
      %p164 = scmp.le.s32.totalorder 1, %s17
      %p165 = scmp.lt.s32.totalorder %s17, 9
      %p166 = pnand %p164, %p165
      %p167 = pneg %p166
      // Predicated region
      $region9: #{lm_head_linear_allreduce.1} parent=5 // pred_check
        _
      $region10: #{lm_head_linear_allreduce.1} parent=5 // pred_check_branch
        %169 = sbr.rel (%p166) target = $region12
      $region11: #{lm_head_linear_allreduce.1} parent=5 // pred_region
        %s170 = ssub.s32 %s17, 1
        // Predicated region
        $region13: #{lm_head_linear_allreduce.1} parent=11 // pred_check
          %p171 = pneg %p102
        $region14: #{lm_head_linear_allreduce.1} parent=11 // pred_check_branch
          %173 = sbr.rel (%p171) target = $region16
        $region15: #{lm_head_linear_allreduce.1} parent=11 // pred_region
          %175 = vsyncadd [#allocation5], 0
          %s177 = sshll.u32 %s2, 4
          %s178 = int_to_ptr.vmem [resolvable:$true] %s177
          %180 = dma.vmem_to_smem %s178, 16, [#allocation6], [#allocation5]
        $region16: #{lm_head_linear_allreduce.1} parent=11 // pred_fallthru
          _
      $region12: #{lm_head_linear_allreduce.1} parent=5 // pred_fallthru
        _
      %p181 = scmp.lt.s32.totalorder %s17, 8
      // Predicated region
      $region17: #{lm_head_linear_allreduce.1} parent=5 // pred_check
        %p182 = pneg %p181
      $region18: #{lm_head_linear_allreduce.1} parent=5 // pred_check_branch
        %184 = sbr.rel (%p182) target = $region20
      $region19: #{lm_head_linear_allreduce.1} parent=5 // pred_region
        // Predicated region
        $region21: #{lm_head_linear_allreduce.1} parent=19 // pred_check
          %p185 = pneg %p49
        $region22: #{lm_head_linear_allreduce.1} parent=19 // pred_check_branch
          %187 = sbr.rel (%p185) target = $region24
        $region23: #{lm_head_linear_allreduce.1} parent=19 // pred_region
          %p188 = scmp.lt.s32.totalorder %s25, 1
          %s189 = scalar_select %p188, %s25, 1
          %s190 = smul.addr %s189, 2
          %s191 = smul.addr %s190, 4
          %s192 = scalar_lea.vmem %s0, %s191
        $region24: #{lm_head_linear_allreduce.1} parent=19 // pred_fallthru
          _
        // Predicated region
        $region25: #{lm_head_linear_allreduce.1} parent=19 // pred_check
          %p193 = pneg %p75
        $region26: #{lm_head_linear_allreduce.1} parent=19 // pred_check_branch
          %195 = sbr.rel (%p193) target = $region28
        $region27: #{lm_head_linear_allreduce.1} parent=19 // pred_region
          %s196 = sand.u32 %s65, 1
          %s197 = scalar_lea.sflag [#allocation3], %s196
          %s198 = sand.u32 %s65, 1
          %s199 = smul.addr %s198, 64
          %s200 = scalar_lea.vmem [#allocation2], %s199
          %s201 = smul.u32 2, %s24
          %203 = vsyncadd %s197, 0
          %s204 = smul.addr %s201, 8
          %s205 = scalar_lea.hbm %s1, %s204
          %s206 = sshll.u32 %s205, 4
          %s207 = int_to_ptr.hbm [resolvable:$true] %s206
          %s208 = sshll.u32 %s200, 4
          %s209 = int_to_ptr.vmem [resolvable:$true] %s208
          %214 = dma.hbm_to_vmem [thread:$0]  %s207, 1024, %s209, %s197, 1024, 256, 16
        $region28: #{lm_head_linear_allreduce.1} parent=19 // pred_fallthru
          _
        // Predicated region
        $region29: #{lm_head_linear_allreduce.1} parent=19 // pred_check
          %p215 = pneg %p122
        $region30: #{lm_head_linear_allreduce.1} parent=19 // pred_check_branch
          %217 = sbr.rel (%p215) target = $region32
        $region31: #{lm_head_linear_allreduce.1} parent=19 // pred_region
          %s218 = smul.u32 2, %s24
          %p219 = scmp.lt.s32.totalorder %s218, 7
          %s220 = scalar_select %p219, %s218, 7
          %s221 = scalar_lea.vmem %s3, %s220
          %s222 = smul.u32 2, %s24
        $region32: #{lm_head_linear_allreduce.1} parent=19 // pred_fallthru
          _
      $region20: #{lm_head_linear_allreduce.1} parent=5 // pred_fallthru
        _
      %p223 = scmp.le.s32.totalorder 1, %s17
      %p224 = scmp.lt.s32.totalorder %s17, 9
      %p225 = pnand %p223, %p224
      %p226 = pneg %p225
      // Predicated region
      $region33: #{lm_head_linear_allreduce.1} parent=5 // pred_check
        _
      $region34: #{lm_head_linear_allreduce.1} parent=5 // pred_check_branch
        %228 = sbr.rel (%p225) target = $region36
      $region35: #{lm_head_linear_allreduce.1} parent=5 // pred_region
        %s229 = ssub.s32 %s17, 1
        %s230 = sand.u32 %s68, 1
        %s231 = scalar_lea.sflag [#allocation3], %s230
        %s232 = sand.u32 %s68, 1
        %s233 = smul.addr %s232, 64
        %s234 = scalar_lea.vmem [#allocation2], %s233
        // Predicated region
        $region37: #{lm_head_linear_allreduce.1} parent=35 // pred_check
          %p235 = pneg %p81
        $region38: #{lm_head_linear_allreduce.1} parent=35 // pred_check_branch
          %237 = sbr.rel (%p235) target = $region40
        $region39: #{lm_head_linear_allreduce.1} parent=35 // pred_region
          %239 = dma.done %s231, 1024
        $region40: #{lm_head_linear_allreduce.1} parent=35 // pred_fallthru
          _
        // Predicated region
        $region41: #{lm_head_linear_allreduce.1} parent=35 // pred_check
          %p240 = pneg %p102
        $region42: #{lm_head_linear_allreduce.1} parent=35 // pred_check_branch
          %242 = sbr.rel (%p240) target = $region44
        $region43: #{lm_head_linear_allreduce.1} parent=35 // pred_region
          %244 = dma.done [#allocation5], 16
        $region44: #{lm_head_linear_allreduce.1} parent=35 // pred_fallthru
          _
        %245 = sfence
        %p246 = scmp.lt.s32.totalorder %s27, 1
        %s247 = scalar_select %p246, %s27, 1
        %s248 = smul.addr %s247, 2
        %s249 = smul.addr %s248, 4
        %s250 = scalar_lea.vmem %s0, %s249
        %p251 = pneg %p55
        %p252 = pneg %p52
        %s253 = sand.u32 %s68, 1
        %s254 = scalar_lea.sflag [#allocation3], %s253
        %s255 = sand.u32 %s68, 1
        %s256 = smul.addr %s255, 64
        %s257 = scalar_lea.vmem [#allocation2], %s256
        %p258 = pneg %p81
        %p259 = pneg %p78
        %p260 = pneg %p102
        %p261 = pneg %p99
        %s262 = smul.u32 2, %s26
        %p263 = scmp.lt.s32.totalorder %s262, 7
        %s264 = scalar_select %p263, %s262, 7
        %s265 = scalar_lea.vmem %s3, %s264
        %p266 = pneg %p128
        %p267 = pneg %p125
        %p268 = pneg %p156
        %p269 = pneg %p153
        %s270 = sand.u32 %s143, 1
        %s271 = scalar_lea.sflag [#allocation4], %s270
        %s272 = sand.u32 %s143, 1
        %s273 = smul.addr %s272, 8
        %s274 = scalar_lea.vmem [#allocation7], %s273
        %p275 = scmp.lt.s32.totalorder %s27, 1
        %s276 = scalar_select %p275, %s27, 1
        %s277 = smul.addr %s276, 2
        %s278 = smul.addr %s277, 4
        %s279 = scalar_lea.vmem %s0, %s278
        %s280 = smul.u32 2, %s26
        %s281 = smul.u32 2, %s26
        %p282 = scmp.lt.s32.totalorder %s281, 7
        %s283 = scalar_select %p282, %s281, 7
        %s284 = scalar_lea.vmem %s3, %s283
        %s285 = smul.u32 2, %s26
        %s286 = smul.u32 2, %s26
        %v287 = vld [vmem:[%s279] sm:$0xf]
        %v288 = vunpack.c.l.bf16 %v287
        %s289 = sld [smem:[#allocation6]]
        %v290 = vstv %s289
        %v291 = vmul.f32 %v288, %v290
        %v292 = vmax.f32 %v291, -448.0
        %v293 = vmin.f32 %v292, 448.0
        %v294 = vand.u32 2147483647, %v293
        %v295 = vmul.f32 %v293, 0.0625
        %v296 = vcvt.f32.f8e4m3b11 %v295
        %vm297 = vweird.f32 %v293
        %v298 = vsel %vm297, 127, %v296
        %v299 = vshrl.u32 %v293, 24
        %v300 = vand.u32 %v299, 128
        %vm301 = vcmp.le.f32.partialorder %v294, 0.0009765625
        %v302 = vsel %vm301, %v300, %v298
        %v303 = vpack.c.b16 %v302, %v302
        %v304 = vpack.c.b8 %v303, %v303
        $region45: #{lm_head_linear_allreduce.1} parent=35
          #allocation8 [shape = 'u8[4096]{0}', space=vmem, size = 0x1000, scoped, tag = 'scoped memory for lm_head_linear_allreduce.1']
          %306 = vst [vmem:[#allocation8] sm:$0xff] %v304
          %v307 = vld [vmem:[#allocation8] sm:$0x3]
          %v308 = vunpack.c.0.f8e4m3b11 %v307
          %v309 = vunpack.c.1.f8e4m3b11 %v307
          %v310 = vunpack.c.2.f8e4m3b11 %v307
          %v311 = vunpack.c.3.f8e4m3b11 %v307
          %v312 = vand.u32 2147483647, %v308
          %vm313 = vcmp.gt.f32.partialorder %v312, 29.0
          %vm314 = vcmp.ne.f32.partialorder %v308, %v308
          %v315 = vmul.f32 %v308, 16.0
          %v316 = vsel %vm314, -0.0, %v315
          %v317 = vsel %vm313, nan, %v316
          %v318 = vand.u32 2147483647, %v309
          %vm319 = vcmp.gt.f32.partialorder %v318, 29.0
          %vm320 = vcmp.ne.f32.partialorder %v309, %v309
          %v321 = vmul.f32 %v309, 16.0
          %v322 = vsel %vm320, -0.0, %v321
          %v323 = vsel %vm319, nan, %v322
          %v324 = vand.u32 2147483647, %v310
          %vm325 = vcmp.gt.f32.partialorder %v324, 29.0
          %vm326 = vcmp.ne.f32.partialorder %v310, %v310
          %v327 = vmul.f32 %v310, 16.0
          %v328 = vsel %vm326, -0.0, %v327
          %v329 = vsel %vm325, nan, %v328
          %v330 = vand.u32 2147483647, %v311
          %vm331 = vcmp.gt.f32.partialorder %v330, 29.0
          %vm332 = vcmp.ne.f32.partialorder %v311, %v311
          %v333 = vmul.f32 %v311, 16.0
          %v334 = vsel %vm332, -0.0, %v333
          %v335 = vsel %vm331, nan, %v334
        %v336 = vpack.c.bf16 %v317, %v317
        %v337 = vld [vmem:[%s234] sm:$0xff]
        %v338 = vld [vmem:[%s234 + $0x8] sm:$0xff]
        %v339 = vld [vmem:[%s234 + $0x10] sm:$0xff]
        %v340 = vld [vmem:[%s234 + $0x18] sm:$0xff]
        %v341 = vld [vmem:[%s234 + $0x20] sm:$0xff]
        %v342 = vld [vmem:[%s234 + $0x28] sm:$0xff]
        %v343 = vld [vmem:[%s234 + $0x30] sm:$0xff]
        %v344 = vld [vmem:[%s234 + $0x38] sm:$0xff]
        $region46: #{lm_head_linear_allreduce.1} parent=35
          #allocation9 [shape = 'u8[4096]{0}', space=vmem, size = 0x1000, scoped, tag = 'scoped memory for lm_head_linear_allreduce.1']
          %345 = vst [vmem:[#allocation9] sm:$0xff] %v337
          %v346 = vld [vmem:[#allocation9] sm:$0x3]
          %v347 = vunpack.c.0.f8e4m3b11 %v346
          %v348 = vunpack.c.1.f8e4m3b11 %v346
          %v349 = vunpack.c.2.f8e4m3b11 %v346
          %v350 = vunpack.c.3.f8e4m3b11 %v346
          %v351 = vand.u32 2147483647, %v347
          %vm352 = vcmp.gt.f32.partialorder %v351, 29.0
          %vm353 = vcmp.ne.f32.partialorder %v347, %v347
          %v354 = vmul.f32 %v347, 16.0
          %v355 = vsel %vm353, -0.0, %v354
          %v356 = vsel %vm352, nan, %v355
          %v357 = vand.u32 2147483647, %v348
          %vm358 = vcmp.gt.f32.partialorder %v357, 29.0
          %vm359 = vcmp.ne.f32.partialorder %v348, %v348
          %v360 = vmul.f32 %v348, 16.0
          %v361 = vsel %vm359, -0.0, %v360
          %v362 = vsel %vm358, nan, %v361
          %v363 = vand.u32 2147483647, %v349
          %vm364 = vcmp.gt.f32.partialorder %v363, 29.0
          %vm365 = vcmp.ne.f32.partialorder %v349, %v349
          %v366 = vmul.f32 %v349, 16.0
          %v367 = vsel %vm365, -0.0, %v366
          %v368 = vsel %vm364, nan, %v367
          %v369 = vand.u32 2147483647, %v350
          %vm370 = vcmp.gt.f32.partialorder %v369, 29.0
          %vm371 = vcmp.ne.f32.partialorder %v350, %v350
          %v372 = vmul.f32 %v350, 16.0
          %v373 = vsel %vm371, -0.0, %v372
          %v374 = vsel %vm370, nan, %v373
        $region47: #{lm_head_linear_allreduce.1} parent=35
          #allocation10 [shape = 'u8[4096]{0}', space=vmem, size = 0x1000, scoped, tag = 'scoped memory for lm_head_linear_allreduce.1']
          %375 = vst [vmem:[#allocation10] sm:$0xff] %v338
          %v376 = vld [vmem:[#allocation10] sm:$0x3]
          %v377 = vunpack.c.0.f8e4m3b11 %v376
          %v378 = vunpack.c.1.f8e4m3b11 %v376
          %v379 = vunpack.c.2.f8e4m3b11 %v376
          %v380 = vunpack.c.3.f8e4m3b11 %v376
          %v381 = vand.u32 2147483647, %v377
          %vm382 = vcmp.gt.f32.partialorder %v381, 29.0
          %vm383 = vcmp.ne.f32.partialorder %v377, %v377
          %v384 = vmul.f32 %v377, 16.0
          %v385 = vsel %vm383, -0.0, %v384
          %v386 = vsel %vm382, nan, %v385
          %v387 = vand.u32 2147483647, %v378
          %vm388 = vcmp.gt.f32.partialorder %v387, 29.0
          %vm389 = vcmp.ne.f32.partialorder %v378, %v378
          %v390 = vmul.f32 %v378, 16.0
          %v391 = vsel %vm389, -0.0, %v390
          %v392 = vsel %vm388, nan, %v391
          %v393 = vand.u32 2147483647, %v379
          %vm394 = vcmp.gt.f32.partialorder %v393, 29.0
          %vm395 = vcmp.ne.f32.partialorder %v379, %v379
          %v396 = vmul.f32 %v379, 16.0
          %v397 = vsel %vm395, -0.0, %v396
          %v398 = vsel %vm394, nan, %v397
          %v399 = vand.u32 2147483647, %v380
          %vm400 = vcmp.gt.f32.partialorder %v399, 29.0
          %vm401 = vcmp.ne.f32.partialorder %v380, %v380
          %v402 = vmul.f32 %v380, 16.0
          %v403 = vsel %vm401, -0.0, %v402
          %v404 = vsel %vm400, nan, %v403
        $region48: #{lm_head_linear_allreduce.1} parent=35
          #allocation11 [shape = 'u8[4096]{0}', space=vmem, size = 0x1000, scoped, tag = 'scoped memory for lm_head_linear_allreduce.1']
          %405 = vst [vmem:[#allocation11] sm:$0xff] %v337
          %s406 = scalar_lea.vmem [#allocation11], 2
          %v407 = vld [vmem:[%s406] sm:$0x3]
          %v408 = vunpack.c.0.f8e4m3b11 %v407
          %v409 = vunpack.c.1.f8e4m3b11 %v407
          %v410 = vunpack.c.2.f8e4m3b11 %v407
          %v411 = vunpack.c.3.f8e4m3b11 %v407
          %v412 = vand.u32 2147483647, %v408
          %vm413 = vcmp.gt.f32.partialorder %v412, 29.0
          %vm414 = vcmp.ne.f32.partialorder %v408, %v408
          %v415 = vmul.f32 %v408, 16.0
          %v416 = vsel %vm414, -0.0, %v415
          %v417 = vsel %vm413, nan, %v416
          %v418 = vand.u32 2147483647, %v409
          %vm419 = vcmp.gt.f32.partialorder %v418, 29.0
          %vm420 = vcmp.ne.f32.partialorder %v409, %v409
          %v421 = vmul.f32 %v409, 16.0
          %v422 = vsel %vm420, -0.0, %v421
          %v423 = vsel %vm419, nan, %v422
          %v424 = vand.u32 2147483647, %v410
          %vm425 = vcmp.gt.f32.partialorder %v424, 29.0
          %vm426 = vcmp.ne.f32.partialorder %v410, %v410
          %v427 = vmul.f32 %v410, 16.0
          %v428 = vsel %vm426, -0.0, %v427
          %v429 = vsel %vm425, nan, %v428
          %v430 = vand.u32 2147483647, %v411
          %vm431 = vcmp.gt.f32.partialorder %v430, 29.0
          %vm432 = vcmp.ne.f32.partialorder %v411, %v411
          %v433 = vmul.f32 %v411, 16.0
          %v434 = vsel %vm432, -0.0, %v433
          %v435 = vsel %vm431, nan, %v434
        $region49: #{lm_head_linear_allreduce.1} parent=35
          #allocation12 [shape = 'u8[4096]{0}', space=vmem, size = 0x1000, scoped, tag = 'scoped memory for lm_head_linear_allreduce.1']
          %436 = vst [vmem:[#allocation12] sm:$0xff] %v338
          %s437 = scalar_lea.vmem [#allocation12], 2
          %v438 = vld [vmem:[%s437] sm:$0x3]
          %v439 = vunpack.c.0.f8e4m3b11 %v438
          %v440 = vunpack.c.1.f8e4m3b11 %v438
          %v441 = vunpack.c.2.f8e4m3b11 %v438
          %v442 = vunpack.c.3.f8e4m3b11 %v438
          %v443 = vand.u32 2147483647, %v439
          %vm444 = vcmp.gt.f32.partialorder %v443, 29.0
          %vm445 = vcmp.ne.f32.partialorder %v439, %v439
          %v446 = vmul.f32 %v439, 16.0
          %v447 = vsel %vm445, -0.0, %v446
          %v448 = vsel %vm444, nan, %v447
          %v449 = vand.u32 2147483647, %v440
          %vm450 = vcmp.gt.f32.partialorder %v449, 29.0
          %vm451 = vcmp.ne.f32.partialorder %v440, %v440
          %v452 = vmul.f32 %v440, 16.0
          %v453 = vsel %vm451, -0.0, %v452
          %v454 = vsel %vm450, nan, %v453
          %v455 = vand.u32 2147483647, %v441
          %vm456 = vcmp.gt.f32.partialorder %v455, 29.0
          %vm457 = vcmp.ne.f32.partialorder %v441, %v441
          %v458 = vmul.f32 %v441, 16.0
          %v459 = vsel %vm457, -0.0, %v458
          %v460 = vsel %vm456, nan, %v459
          %v461 = vand.u32 2147483647, %v442
          %vm462 = vcmp.gt.f32.partialorder %v461, 29.0
          %vm463 = vcmp.ne.f32.partialorder %v442, %v442
          %v464 = vmul.f32 %v442, 16.0
          %v465 = vsel %vm463, -0.0, %v464
          %v466 = vsel %vm462, nan, %v465
        $region50: #{lm_head_linear_allreduce.1} parent=35
          #allocation13 [shape = 'u8[4096]{0}', space=vmem, size = 0x1000, scoped, tag = 'scoped memory for lm_head_linear_allreduce.1']
          %467 = vst [vmem:[#allocation13] sm:$0xff] %v337
          %s468 = scalar_lea.vmem [#allocation13], 4
          %v469 = vld [vmem:[%s468] sm:$0x3]
          %v470 = vunpack.c.0.f8e4m3b11 %v469
          %v471 = vunpack.c.1.f8e4m3b11 %v469
          %v472 = vunpack.c.2.f8e4m3b11 %v469
          %v473 = vunpack.c.3.f8e4m3b11 %v469
          %v474 = vand.u32 2147483647, %v470
          %vm475 = vcmp.gt.f32.partialorder %v474, 29.0
          %vm476 = vcmp.ne.f32.partialorder %v470, %v470
          %v477 = vmul.f32 %v470, 16.0
          %v478 = vsel %vm476, -0.0, %v477
          %v479 = vsel %vm475, nan, %v478
          %v480 = vand.u32 2147483647, %v471
          %vm481 = vcmp.gt.f32.partialorder %v480, 29.0
          %vm482 = vcmp.ne.f32.partialorder %v471, %v471
          %v483 = vmul.f32 %v471, 16.0
          %v484 = vsel %vm482, -0.0, %v483
          %v485 = vsel %vm481, nan, %v484
          %v486 = vand.u32 2147483647, %v472
          %vm487 = vcmp.gt.f32.partialorder %v486, 29.0
          %vm488 = vcmp.ne.f32.partialorder %v472, %v472
          %v489 = vmul.f32 %v472, 16.0
          %v490 = vsel %vm488, -0.0, %v489
          %v491 = vsel %vm487, nan, %v490
          %v492 = vand.u32 2147483647, %v473
          %vm493 = vcmp.gt.f32.partialorder %v492, 29.0
          %vm494 = vcmp.ne.f32.partialorder %v473, %v473
          %v495 = vmul.f32 %v473, 16.0
          %v496 = vsel %vm494, -0.0, %v495
          %v497 = vsel %vm493, nan, %v496
        $region51: #{lm_head_linear_allreduce.1} parent=35
          #allocation14 [shape = 'u8[4096]{0}', space=vmem, size = 0x1000, scoped, tag = 'scoped memory for lm_head_linear_allreduce.1']
          %498 = vst [vmem:[#allocation14] sm:$0xff] %v338
          %s499 = scalar_lea.vmem [#allocation14], 4
          %v500 = vld [vmem:[%s499] sm:$0x3]
          %v501 = vunpack.c.0.f8e4m3b11 %v500
          %v502 = vunpack.c.1.f8e4m3b11 %v500
          %v503 = vunpack.c.2.f8e4m3b11 %v500
          %v504 = vunpack.c.3.f8e4m3b11 %v500
          %v505 = vand.u32 2147483647, %v501
          %vm506 = vcmp.gt.f32.partialorder %v505, 29.0
          %vm507 = vcmp.ne.f32.partialorder %v501, %v501
          %v508 = vmul.f32 %v501, 16.0
          %v509 = vsel %vm507, -0.0, %v508
          %v510 = vsel %vm506, nan, %v509
          %v511 = vand.u32 2147483647, %v502
          %vm512 = vcmp.gt.f32.partialorder %v511, 29.0
          %vm513 = vcmp.ne.f32.partialorder %v502, %v502
          %v514 = vmul.f32 %v502, 16.0
          %v515 = vsel %vm513, -0.0, %v514
          %v516 = vsel %vm512, nan, %v515
          %v517 = vand.u32 2147483647, %v503
          %vm518 = vcmp.gt.f32.partialorder %v517, 29.0
          %vm519 = vcmp.ne.f32.partialorder %v503, %v503
          %v520 = vmul.f32 %v503, 16.0
          %v521 = vsel %vm519, -0.0, %v520
          %v522 = vsel %vm518, nan, %v521
          %v523 = vand.u32 2147483647, %v504
          %vm524 = vcmp.gt.f32.partialorder %v523, 29.0
          %vm525 = vcmp.ne.f32.partialorder %v504, %v504
          %v526 = vmul.f32 %v504, 16.0
          %v527 = vsel %vm525, -0.0, %v526
          %v528 = vsel %vm524, nan, %v527
        $region52: #{lm_head_linear_allreduce.1} parent=35
          #allocation15 [shape = 'u8[4096]{0}', space=vmem, size = 0x1000, scoped, tag = 'scoped memory for lm_head_linear_allreduce.1']
          %529 = vst [vmem:[#allocation15] sm:$0xff] %v337
          %s530 = scalar_lea.vmem [#allocation15], 6
          %v531 = vld [vmem:[%s530] sm:$0x3]
          %v532 = vunpack.c.0.f8e4m3b11 %v531
          %v533 = vunpack.c.1.f8e4m3b11 %v531
          %v534 = vunpack.c.2.f8e4m3b11 %v531
          %v535 = vunpack.c.3.f8e4m3b11 %v531
          %v536 = vand.u32 2147483647, %v532
          %vm537 = vcmp.gt.f32.partialorder %v536, 29.0
          %vm538 = vcmp.ne.f32.partialorder %v532, %v532
          %v539 = vmul.f32 %v532, 16.0
          %v540 = vsel %vm538, -0.0, %v539
          %v541 = vsel %vm537, nan, %v540
          %v542 = vand.u32 2147483647, %v533
          %vm543 = vcmp.gt.f32.partialorder %v542, 29.0
          %vm544 = vcmp.ne.f32.partialorder %v533, %v533
          %v545 = vmul.f32 %v533, 16.0
          %v546 = vsel %vm544, -0.0, %v545
          %v547 = vsel %vm543, nan, %v546
          %v548 = vand.u32 2147483647, %v534
          %vm549 = vcmp.gt.f32.partialorder %v548, 29.0
          %vm550 = vcmp.ne.f32.partialorder %v534, %v534
          %v551 = vmul.f32 %v534, 16.0
          %v552 = vsel %vm550, -0.0, %v551
          %v553 = vsel %vm549, nan, %v552
          %v554 = vand.u32 2147483647, %v535
          %vm555 = vcmp.gt.f32.partialorder %v554, 29.0
          %vm556 = vcmp.ne.f32.partialorder %v535, %v535
          %v557 = vmul.f32 %v535, 16.0
          %v558 = vsel %vm556, -0.0, %v557
          %v559 = vsel %vm555, nan, %v558
        $region53: #{lm_head_linear_allreduce.1} parent=35
          #allocation16 [shape = 'u8[4096]{0}', space=vmem, size = 0x1000, scoped, tag = 'scoped memory for lm_head_linear_allreduce.1']
          %560 = vst [vmem:[#allocation16] sm:$0xff] %v338
          %s561 = scalar_lea.vmem [#allocation16], 6
          %v562 = vld [vmem:[%s561] sm:$0x3]
          %v563 = vunpack.c.0.f8e4m3b11 %v562
          %v564 = vunpack.c.1.f8e4m3b11 %v562
          %v565 = vunpack.c.2.f8e4m3b11 %v562
          %v566 = vunpack.c.3.f8e4m3b11 %v562
          %v567 = vand.u32 2147483647, %v563
          %vm568 = vcmp.gt.f32.partialorder %v567, 29.0
          %vm569 = vcmp.ne.f32.partialorder %v563, %v563
          %v570 = vmul.f32 %v563, 16.0
          %v571 = vsel %vm569, -0.0, %v570
          %v572 = vsel %vm568, nan, %v571
          %v573 = vand.u32 2147483647, %v564
          %vm574 = vcmp.gt.f32.partialorder %v573, 29.0
          %vm575 = vcmp.ne.f32.partialorder %v564, %v564
          %v576 = vmul.f32 %v564, 16.0
          %v577 = vsel %vm575, -0.0, %v576
          %v578 = vsel %vm574, nan, %v577
          %v579 = vand.u32 2147483647, %v565
          %vm580 = vcmp.gt.f32.partialorder %v579, 29.0
          %vm581 = vcmp.ne.f32.partialorder %v565, %v565
          %v582 = vmul.f32 %v565, 16.0
          %v583 = vsel %vm581, -0.0, %v582
          %v584 = vsel %vm580, nan, %v583
          %v585 = vand.u32 2147483647, %v566
          %vm586 = vcmp.gt.f32.partialorder %v585, 29.0
          %vm587 = vcmp.ne.f32.partialorder %v566, %v566
          %v588 = vmul.f32 %v566, 16.0
          %v589 = vsel %vm587, -0.0, %v588
          %v590 = vsel %vm586, nan, %v589
        $region54: #{lm_head_linear_allreduce.1} parent=35
          #allocation17 [shape = 'u8[4096]{0}', space=vmem, size = 0x1000, scoped, tag = 'scoped memory for lm_head_linear_allreduce.1']
          %591 = vst [vmem:[#allocation17] sm:$0xff] %v339
          %v592 = vld [vmem:[#allocation17] sm:$0x3]
          %v593 = vunpack.c.0.f8e4m3b11 %v592
          %v594 = vunpack.c.1.f8e4m3b11 %v592
          %v595 = vunpack.c.2.f8e4m3b11 %v592
          %v596 = vunpack.c.3.f8e4m3b11 %v592
          %v597 = vand.u32 2147483647, %v593
          %vm598 = vcmp.gt.f32.partialorder %v597, 29.0
          %vm599 = vcmp.ne.f32.partialorder %v593, %v593
          %v600 = vmul.f32 %v593, 16.0
          %v601 = vsel %vm599, -0.0, %v600
          %v602 = vsel %vm598, nan, %v601
          %v603 = vand.u32 2147483647, %v594
          %vm604 = vcmp.gt.f32.partialorder %v603, 29.0
          %vm605 = vcmp.ne.f32.partialorder %v594, %v594
          %v606 = vmul.f32 %v594, 16.0
          %v607 = vsel %vm605, -0.0, %v606
          %v608 = vsel %vm604, nan, %v607
          %v609 = vand.u32 2147483647, %v595
          %vm610 = vcmp.gt.f32.partialorder %v609, 29.0
          %vm611 = vcmp.ne.f32.partialorder %v595, %v595
          %v612 = vmul.f32 %v595, 16.0
          %v613 = vsel %vm611, -0.0, %v612
          %v614 = vsel %vm610, nan, %v613
          %v615 = vand.u32 2147483647, %v596
          %vm616 = vcmp.gt.f32.partialorder %v615, 29.0
          %vm617 = vcmp.ne.f32.partialorder %v596, %v596
          %v618 = vmul.f32 %v596, 16.0
          %v619 = vsel %vm617, -0.0, %v618
          %v620 = vsel %vm616, nan, %v619
        $region55: #{lm_head_linear_allreduce.1} parent=35
          #allocation18 [shape = 'u8[4096]{0}', space=vmem, size = 0x1000, scoped, tag = 'scoped memory for lm_head_linear_allreduce.1']
          %621 = vst [vmem:[#allocation18] sm:$0xff] %v340
          %v622 = vld [vmem:[#allocation18] sm:$0x3]
          %v623 = vunpack.c.0.f8e4m3b11 %v622
          %v624 = vunpack.c.1.f8e4m3b11 %v622
          %v625 = vunpack.c.2.f8e4m3b11 %v622
          %v626 = vunpack.c.3.f8e4m3b11 %v622
          %v627 = vand.u32 2147483647, %v623
          %vm628 = vcmp.gt.f32.partialorder %v627, 29.0
          %vm629 = vcmp.ne.f32.partialorder %v623, %v623
          %v630 = vmul.f32 %v623, 16.0
          %v631 = vsel %vm629, -0.0, %v630
          %v632 = vsel %vm628, nan, %v631
          %v633 = vand.u32 2147483647, %v624
          %vm634 = vcmp.gt.f32.partialorder %v633, 29.0
          %vm635 = vcmp.ne.f32.partialorder %v624, %v624
          %v636 = vmul.f32 %v624, 16.0
          %v637 = vsel %vm635, -0.0, %v636
          %v638 = vsel %vm634, nan, %v637
          %v639 = vand.u32 2147483647, %v625
          %vm640 = vcmp.gt.f32.partialorder %v639, 29.0
          %vm641 = vcmp.ne.f32.partialorder %v625, %v625
          %v642 = vmul.f32 %v625, 16.0
          %v643 = vsel %vm641, -0.0, %v642
          %v644 = vsel %vm640, nan, %v643
          %v645 = vand.u32 2147483647, %v626
          %vm646 = vcmp.gt.f32.partialorder %v645, 29.0
          %vm647 = vcmp.ne.f32.partialorder %v626, %v626
          %v648 = vmul.f32 %v626, 16.0
          %v649 = vsel %vm647, -0.0, %v648
          %v650 = vsel %vm646, nan, %v649
        $region56: #{lm_head_linear_allreduce.1} parent=35
          #allocation19 [shape = 'u8[4096]{0}', space=vmem, size = 0x1000, scoped, tag = 'scoped memory for lm_head_linear_allreduce.1']
          %651 = vst [vmem:[#allocation19] sm:$0xff] %v339
          %s652 = scalar_lea.vmem [#allocation19], 2
          %v653 = vld [vmem:[%s652] sm:$0x3]
          %v654 = vunpack.c.0.f8e4m3b11 %v653
          %v655 = vunpack.c.1.f8e4m3b11 %v653
          %v656 = vunpack.c.2.f8e4m3b11 %v653
          %v657 = vunpack.c.3.f8e4m3b11 %v653
          %v658 = vand.u32 2147483647, %v654
          %vm659 = vcmp.gt.f32.partialorder %v658, 29.0
          %vm660 = vcmp.ne.f32.partialorder %v654, %v654
          %v661 = vmul.f32 %v654, 16.0
          %v662 = vsel %vm660, -0.0, %v661
          %v663 = vsel %vm659, nan, %v662
          %v664 = vand.u32 2147483647, %v655
          %vm665 = vcmp.gt.f32.partialorder %v664, 29.0
          %vm666 = vcmp.ne.f32.partialorder %v655, %v655
          %v667 = vmul.f32 %v655, 16.0
          %v668 = vsel %vm666, -0.0, %v667
          %v669 = vsel %vm665, nan, %v668
          %v670 = vand.u32 2147483647, %v656
          %vm671 = vcmp.gt.f32.partialorder %v670, 29.0
          %vm672 = vcmp.ne.f32.partialorder %v656, %v656
          %v673 = vmul.f32 %v656, 16.0
          %v674 = vsel %vm672, -0.0, %v673
          %v675 = vsel %vm671, nan, %v674
          %v676 = vand.u32 2147483647, %v657
          %vm677 = vcmp.gt.f32.partialorder %v676, 29.0
          %vm678 = vcmp.ne.f32.partialorder %v657, %v657
          %v679 = vmul.f32 %v657, 16.0
          %v680 = vsel %vm678, -0.0, %v679
          %v681 = vsel %vm677, nan, %v680
        $region57: #{lm_head_linear_allreduce.1} parent=35
          #allocation20 [shape = 'u8[4096]{0}', space=vmem, size = 0x1000, scoped, tag = 'scoped memory for lm_head_linear_allreduce.1']
          %682 = vst [vmem:[#allocation20] sm:$0xff] %v340
          %s683 = scalar_lea.vmem [#allocation20], 2
          %v684 = vld [vmem:[%s683] sm:$0x3]
          %v685 = vunpack.c.0.f8e4m3b11 %v684
          %v686 = vunpack.c.1.f8e4m3b11 %v684
          %v687 = vunpack.c.2.f8e4m3b11 %v684
          %v688 = vunpack.c.3.f8e4m3b11 %v684
          %v689 = vand.u32 2147483647, %v685
          %vm690 = vcmp.gt.f32.partialorder %v689, 29.0
          %vm691 = vcmp.ne.f32.partialorder %v685, %v685
          %v692 = vmul.f32 %v685, 16.0
          %v693 = vsel %vm691, -0.0, %v692
          %v694 = vsel %vm690, nan, %v693
          %v695 = vand.u32 2147483647, %v686
          %vm696 = vcmp.gt.f32.partialorder %v695, 29.0
          %vm697 = vcmp.ne.f32.partialorder %v686, %v686
          %v698 = vmul.f32 %v686, 16.0
          %v699 = vsel %vm697, -0.0, %v698
          %v700 = vsel %vm696, nan, %v699
          %v701 = vand.u32 2147483647, %v687
          %vm702 = vcmp.gt.f32.partialorder %v701, 29.0
          %vm703 = vcmp.ne.f32.partialorder %v687, %v687
          %v704 = vmul.f32 %v687, 16.0
          %v705 = vsel %vm703, -0.0, %v704
          %v706 = vsel %vm702, nan, %v705
          %v707 = vand.u32 2147483647, %v688
          %vm708 = vcmp.gt.f32.partialorder %v707, 29.0
          %vm709 = vcmp.ne.f32.partialorder %v688, %v688
          %v710 = vmul.f32 %v688, 16.0
          %v711 = vsel %vm709, -0.0, %v710
          %v712 = vsel %vm708, nan, %v711
        $region58: #{lm_head_linear_allreduce.1} parent=35
          #allocation21 [shape = 'u8[4096]{0}', space=vmem, size = 0x1000, scoped, tag = 'scoped memory for lm_head_linear_allreduce.1']
          %713 = vst [vmem:[#allocation21] sm:$0xff] %v339
          %s714 = scalar_lea.vmem [#allocation21], 4
          %v715 = vld [vmem:[%s714] sm:$0x3]
          %v716 = vunpack.c.0.f8e4m3b11 %v715
          %v717 = vunpack.c.1.f8e4m3b11 %v715
          %v718 = vunpack.c.2.f8e4m3b11 %v715
          %v719 = vunpack.c.3.f8e4m3b11 %v715
          %v720 = vand.u32 2147483647, %v716
          %vm721 = vcmp.gt.f32.partialorder %v720, 29.0
          %vm722 = vcmp.ne.f32.partialorder %v716, %v716
          %v723 = vmul.f32 %v716, 16.0
          %v724 = vsel %vm722, -0.0, %v723
          %v725 = vsel %vm721, nan, %v724
          %v726 = vand.u32 2147483647, %v717
          %vm727 = vcmp.gt.f32.partialorder %v726, 29.0
          %vm728 = vcmp.ne.f32.partialorder %v717, %v717
          %v729 = vmul.f32 %v717, 16.0
          %v730 = vsel %vm728, -0.0, %v729
          %v731 = vsel %vm727, nan, %v730
          %v732 = vand.u32 2147483647, %v718
          %vm733 = vcmp.gt.f32.partialorder %v732, 29.0
          %vm734 = vcmp.ne.f32.partialorder %v718, %v718
          %v735 = vmul.f32 %v718, 16.0
          %v736 = vsel %vm734, -0.0, %v735
          %v737 = vsel %vm733, nan, %v736
          %v738 = vand.u32 2147483647, %v719
          %vm739 = vcmp.gt.f32.partialorder %v738, 29.0
          %vm740 = vcmp.ne.f32.partialorder %v719, %v719
          %v741 = vmul.f32 %v719, 16.0
          %v742 = vsel %vm740, -0.0, %v741
          %v743 = vsel %vm739, nan, %v742
        $region59: #{lm_head_linear_allreduce.1} parent=35
          #allocation22 [shape = 'u8[4096]{0}', space=vmem, size = 0x1000, scoped, tag = 'scoped memory for lm_head_linear_allreduce.1']
          %744 = vst [vmem:[#allocation22] sm:$0xff] %v340
          %s745 = scalar_lea.vmem [#allocation22], 4
          %v746 = vld [vmem:[%s745] sm:$0x3]
          %v747 = vunpack.c.0.f8e4m3b11 %v746
          %v748 = vunpack.c.1.f8e4m3b11 %v746
          %v749 = vunpack.c.2.f8e4m3b11 %v746
          %v750 = vunpack.c.3.f8e4m3b11 %v746
          %v751 = vand.u32 2147483647, %v747
          %vm752 = vcmp.gt.f32.partialorder %v751, 29.0
          %vm753 = vcmp.ne.f32.partialorder %v747, %v747
          %v754 = vmul.f32 %v747, 16.0
          %v755 = vsel %vm753, -0.0, %v754
          %v756 = vsel %vm752, nan, %v755
          %v757 = vand.u32 2147483647, %v748
          %vm758 = vcmp.gt.f32.partialorder %v757, 29.0
          %vm759 = vcmp.ne.f32.partialorder %v748, %v748
          %v760 = vmul.f32 %v748, 16.0
          %v761 = vsel %vm759, -0.0, %v760
          %v762 = vsel %vm758, nan, %v761
          %v763 = vand.u32 2147483647, %v749
          %vm764 = vcmp.gt.f32.partialorder %v763, 29.0
          %vm765 = vcmp.ne.f32.partialorder %v749, %v749
          %v766 = vmul.f32 %v749, 16.0
          %v767 = vsel %vm765, -0.0, %v766
          %v768 = vsel %vm764, nan, %v767
          %v769 = vand.u32 2147483647, %v750
          %vm770 = vcmp.gt.f32.partialorder %v769, 29.0
          %vm771 = vcmp.ne.f32.partialorder %v750, %v750
          %v772 = vmul.f32 %v750, 16.0
          %v773 = vsel %vm771, -0.0, %v772
          %v774 = vsel %vm770, nan, %v773
        $region60: #{lm_head_linear_allreduce.1} parent=35
          #allocation23 [shape = 'u8[4096]{0}', space=vmem, size = 0x1000, scoped, tag = 'scoped memory for lm_head_linear_allreduce.1']
          %775 = vst [vmem:[#allocation23] sm:$0xff] %v339
          %s776 = scalar_lea.vmem [#allocation23], 6
          %v777 = vld [vmem:[%s776] sm:$0x3]
          %v778 = vunpack.c.0.f8e4m3b11 %v777
          %v779 = vunpack.c.1.f8e4m3b11 %v777
          %v780 = vunpack.c.2.f8e4m3b11 %v777
          %v781 = vunpack.c.3.f8e4m3b11 %v777
          %v782 = vand.u32 2147483647, %v778
          %vm783 = vcmp.gt.f32.partialorder %v782, 29.0
          %vm784 = vcmp.ne.f32.partialorder %v778, %v778
          %v785 = vmul.f32 %v778, 16.0
          %v786 = vsel %vm784, -0.0, %v785
          %v787 = vsel %vm783, nan, %v786
          %v788 = vand.u32 2147483647, %v779
          %vm789 = vcmp.gt.f32.partialorder %v788, 29.0
          %vm790 = vcmp.ne.f32.partialorder %v779, %v779
          %v791 = vmul.f32 %v779, 16.0
          %v792 = vsel %vm790, -0.0, %v791
          %v793 = vsel %vm789, nan, %v792
          %v794 = vand.u32 2147483647, %v780
          %vm795 = vcmp.gt.f32.partialorder %v794, 29.0
          %vm796 = vcmp.ne.f32.partialorder %v780, %v780
          %v797 = vmul.f32 %v780, 16.0
          %v798 = vsel %vm796, -0.0, %v797
          %v799 = vsel %vm795, nan, %v798
          %v800 = vand.u32 2147483647, %v781
          %vm801 = vcmp.gt.f32.partialorder %v800, 29.0
          %vm802 = vcmp.ne.f32.partialorder %v781, %v781
          %v803 = vmul.f32 %v781, 16.0
          %v804 = vsel %vm802, -0.0, %v803
          %v805 = vsel %vm801, nan, %v804
        $region61: #{lm_head_linear_allreduce.1} parent=35
          #allocation24 [shape = 'u8[4096]{0}', space=vmem, size = 0x1000, scoped, tag = 'scoped memory for lm_head_linear_allreduce.1']
          %806 = vst [vmem:[#allocation24] sm:$0xff] %v340
          %s807 = scalar_lea.vmem [#allocation24], 6
          %v808 = vld [vmem:[%s807] sm:$0x3]
          %v809 = vunpack.c.0.f8e4m3b11 %v808
          %v810 = vunpack.c.1.f8e4m3b11 %v808
          %v811 = vunpack.c.2.f8e4m3b11 %v808
          %v812 = vunpack.c.3.f8e4m3b11 %v808
          %v813 = vand.u32 2147483647, %v809
          %vm814 = vcmp.gt.f32.partialorder %v813, 29.0
          %vm815 = vcmp.ne.f32.partialorder %v809, %v809
          %v816 = vmul.f32 %v809, 16.0
          %v817 = vsel %vm815, -0.0, %v816
          %v818 = vsel %vm814, nan, %v817
          %v819 = vand.u32 2147483647, %v810
          %vm820 = vcmp.gt.f32.partialorder %v819, 29.0
          %vm821 = vcmp.ne.f32.partialorder %v810, %v810
          %v822 = vmul.f32 %v810, 16.0
          %v823 = vsel %vm821, -0.0, %v822
          %v824 = vsel %vm820, nan, %v823
          %v825 = vand.u32 2147483647, %v811
          %vm826 = vcmp.gt.f32.partialorder %v825, 29.0
          %vm827 = vcmp.ne.f32.partialorder %v811, %v811
          %v828 = vmul.f32 %v811, 16.0
          %v829 = vsel %vm827, -0.0, %v828
          %v830 = vsel %vm826, nan, %v829
          %v831 = vand.u32 2147483647, %v812
          %vm832 = vcmp.gt.f32.partialorder %v831, 29.0
          %vm833 = vcmp.ne.f32.partialorder %v812, %v812
          %v834 = vmul.f32 %v812, 16.0
          %v835 = vsel %vm833, -0.0, %v834
          %v836 = vsel %vm832, nan, %v835
        $region62: #{lm_head_linear_allreduce.1} parent=35
          #allocation25 [shape = 'u8[4096]{0}', space=vmem, size = 0x1000, scoped, tag = 'scoped memory for lm_head_linear_allreduce.1']
          %837 = vst [vmem:[#allocation25] sm:$0xff] %v341
          %v838 = vld [vmem:[#allocation25] sm:$0x3]
          %v839 = vunpack.c.0.f8e4m3b11 %v838
          %v840 = vunpack.c.1.f8e4m3b11 %v838
          %v841 = vunpack.c.2.f8e4m3b11 %v838
          %v842 = vunpack.c.3.f8e4m3b11 %v838
          %v843 = vand.u32 2147483647, %v839
          %vm844 = vcmp.gt.f32.partialorder %v843, 29.0
          %vm845 = vcmp.ne.f32.partialorder %v839, %v839
          %v846 = vmul.f32 %v839, 16.0
          %v847 = vsel %vm845, -0.0, %v846
          %v848 = vsel %vm844, nan, %v847
          %v849 = vand.u32 2147483647, %v840
          %vm850 = vcmp.gt.f32.partialorder %v849, 29.0
          %vm851 = vcmp.ne.f32.partialorder %v840, %v840
          %v852 = vmul.f32 %v840, 16.0
          %v853 = vsel %vm851, -0.0, %v852
          %v854 = vsel %vm850, nan, %v853
          %v855 = vand.u32 2147483647, %v841
          %vm856 = vcmp.gt.f32.partialorder %v855, 29.0
          %vm857 = vcmp.ne.f32.partialorder %v841, %v841
          %v858 = vmul.f32 %v841, 16.0
          %v859 = vsel %vm857, -0.0, %v858
          %v860 = vsel %vm856, nan, %v859
          %v861 = vand.u32 2147483647, %v842
          %vm862 = vcmp.gt.f32.partialorder %v861, 29.0
          %vm863 = vcmp.ne.f32.partialorder %v842, %v842
          %v864 = vmul.f32 %v842, 16.0
          %v865 = vsel %vm863, -0.0, %v864
          %v866 = vsel %vm862, nan, %v865
        $region63: #{lm_head_linear_allreduce.1} parent=35
          #allocation26 [shape = 'u8[4096]{0}', space=vmem, size = 0x1000, scoped, tag = 'scoped memory for lm_head_linear_allreduce.1']
          %867 = vst [vmem:[#allocation26] sm:$0xff] %v342
          %v868 = vld [vmem:[#allocation26] sm:$0x3]
          %v869 = vunpack.c.0.f8e4m3b11 %v868
          %v870 = vunpack.c.1.f8e4m3b11 %v868
          %v871 = vunpack.c.2.f8e4m3b11 %v868
          %v872 = vunpack.c.3.f8e4m3b11 %v868
          %v873 = vand.u32 2147483647, %v869
          %vm874 = vcmp.gt.f32.partialorder %v873, 29.0
          %vm875 = vcmp.ne.f32.partialorder %v869, %v869
          %v876 = vmul.f32 %v869, 16.0
          %v877 = vsel %vm875, -0.0, %v876
          %v878 = vsel %vm874, nan, %v877
          %v879 = vand.u32 2147483647, %v870
          %vm880 = vcmp.gt.f32.partialorder %v879, 29.0
          %vm881 = vcmp.ne.f32.partialorder %v870, %v870
          %v882 = vmul.f32 %v870, 16.0
          %v883 = vsel %vm881, -0.0, %v882
          %v884 = vsel %vm880, nan, %v883
          %v885 = vand.u32 2147483647, %v871
          %vm886 = vcmp.gt.f32.partialorder %v885, 29.0
          %vm887 = vcmp.ne.f32.partialorder %v871, %v871
          %v888 = vmul.f32 %v871, 16.0
          %v889 = vsel %vm887, -0.0, %v888
          %v890 = vsel %vm886, nan, %v889
          %v891 = vand.u32 2147483647, %v872
          %vm892 = vcmp.gt.f32.partialorder %v891, 29.0
          %vm893 = vcmp.ne.f32.partialorder %v872, %v872
          %v894 = vmul.f32 %v872, 16.0
          %v895 = vsel %vm893, -0.0, %v894
          %v896 = vsel %vm892, nan, %v895
        $region64: #{lm_head_linear_allreduce.1} parent=35
          #allocation27 [shape = 'u8[4096]{0}', space=vmem, size = 0x1000, scoped, tag = 'scoped memory for lm_head_linear_allreduce.1']
          %897 = vst [vmem:[#allocation27] sm:$0xff] %v341
          %s898 = scalar_lea.vmem [#allocation27], 2
          %v899 = vld [vmem:[%s898] sm:$0x3]
          %v900 = vunpack.c.0.f8e4m3b11 %v899
          %v901 = vunpack.c.1.f8e4m3b11 %v899
          %v902 = vunpack.c.2.f8e4m3b11 %v899
          %v903 = vunpack.c.3.f8e4m3b11 %v899
          %v904 = vand.u32 2147483647, %v900
          %vm905 = vcmp.gt.f32.partialorder %v904, 29.0
          %vm906 = vcmp.ne.f32.partialorder %v900, %v900
          %v907 = vmul.f32 %v900, 16.0
          %v908 = vsel %vm906, -0.0, %v907
          %v909 = vsel %vm905, nan, %v908
          %v910 = vand.u32 2147483647, %v901
          %vm911 = vcmp.gt.f32.partialorder %v910, 29.0
          %vm912 = vcmp.ne.f32.partialorder %v901, %v901
          %v913 = vmul.f32 %v901, 16.0
          %v914 = vsel %vm912, -0.0, %v913
          %v915 = vsel %vm911, nan, %v914
          %v916 = vand.u32 2147483647, %v902
          %vm917 = vcmp.gt.f32.partialorder %v916, 29.0
          %vm918 = vcmp.ne.f32.partialorder %v902, %v902
          %v919 = vmul.f32 %v902, 16.0
          %v920 = vsel %vm918, -0.0, %v919
          %v921 = vsel %vm917, nan, %v920
          %v922 = vand.u32 2147483647, %v903
          %vm923 = vcmp.gt.f32.partialorder %v922, 29.0
          %vm924 = vcmp.ne.f32.partialorder %v903, %v903
          %v925 = vmul.f32 %v903, 16.0
          %v926 = vsel %vm924, -0.0, %v925
          %v927 = vsel %vm923, nan, %v926
        $region65: #{lm_head_linear_allreduce.1} parent=35
          #allocation28 [shape = 'u8[4096]{0}', space=vmem, size = 0x1000, scoped, tag = 'scoped memory for lm_head_linear_allreduce.1']
          %928 = vst [vmem:[#allocation28] sm:$0xff] %v342
          %s929 = scalar_lea.vmem [#allocation28], 2
          %v930 = vld [vmem:[%s929] sm:$0x3]
          %v931 = vunpack.c.0.f8e4m3b11 %v930
          %v932 = vunpack.c.1.f8e4m3b11 %v930
          %v933 = vunpack.c.2.f8e4m3b11 %v930
          %v934 = vunpack.c.3.f8e4m3b11 %v930
          %v935 = vand.u32 2147483647, %v931
          %vm936 = vcmp.gt.f32.partialorder %v935, 29.0
          %vm937 = vcmp.ne.f32.partialorder %v931, %v931
          %v938 = vmul.f32 %v931, 16.0
          %v939 = vsel %vm937, -0.0, %v938
          %v940 = vsel %vm936, nan, %v939
          %v941 = vand.u32 2147483647, %v932
          %vm942 = vcmp.gt.f32.partialorder %v941, 29.0
          %vm943 = vcmp.ne.f32.partialorder %v932, %v932
          %v944 = vmul.f32 %v932, 16.0
          %v945 = vsel %vm943, -0.0, %v944
          %v946 = vsel %vm942, nan, %v945
          %v947 = vand.u32 2147483647, %v933
          %vm948 = vcmp.gt.f32.partialorder %v947, 29.0
          %vm949 = vcmp.ne.f32.partialorder %v933, %v933
          %v950 = vmul.f32 %v933, 16.0
          %v951 = vsel %vm949, -0.0, %v950
          %v952 = vsel %vm948, nan, %v951
          %v953 = vand.u32 2147483647, %v934
          %vm954 = vcmp.gt.f32.partialorder %v953, 29.0
          %vm955 = vcmp.ne.f32.partialorder %v934, %v934
          %v956 = vmul.f32 %v934, 16.0
          %v957 = vsel %vm955, -0.0, %v956
          %v958 = vsel %vm954, nan, %v957
        $region66: #{lm_head_linear_allreduce.1} parent=35
          #allocation29 [shape = 'u8[4096]{0}', space=vmem, size = 0x1000, scoped, tag = 'scoped memory for lm_head_linear_allreduce.1']
          %959 = vst [vmem:[#allocation29] sm:$0xff] %v341
          %s960 = scalar_lea.vmem [#allocation29], 4
          %v961 = vld [vmem:[%s960] sm:$0x3]
          %v962 = vunpack.c.0.f8e4m3b11 %v961
          %v963 = vunpack.c.1.f8e4m3b11 %v961
          %v964 = vunpack.c.2.f8e4m3b11 %v961
          %v965 = vunpack.c.3.f8e4m3b11 %v961
          %v966 = vand.u32 2147483647, %v962
          %vm967 = vcmp.gt.f32.partialorder %v966, 29.0
          %vm968 = vcmp.ne.f32.partialorder %v962, %v962
          %v969 = vmul.f32 %v962, 16.0
          %v970 = vsel %vm968, -0.0, %v969
          %v971 = vsel %vm967, nan, %v970
          %v972 = vand.u32 2147483647, %v963
          %vm973 = vcmp.gt.f32.partialorder %v972, 29.0
          %vm974 = vcmp.ne.f32.partialorder %v963, %v963
          %v975 = vmul.f32 %v963, 16.0
          %v976 = vsel %vm974, -0.0, %v975
          %v977 = vsel %vm973, nan, %v976
          %v978 = vand.u32 2147483647, %v964
          %vm979 = vcmp.gt.f32.partialorder %v978, 29.0
          %vm980 = vcmp.ne.f32.partialorder %v964, %v964
          %v981 = vmul.f32 %v964, 16.0
          %v982 = vsel %vm980, -0.0, %v981
          %v983 = vsel %vm979, nan, %v982
          %v984 = vand.u32 2147483647, %v965
          %vm985 = vcmp.gt.f32.partialorder %v984, 29.0
          %vm986 = vcmp.ne.f32.partialorder %v965, %v965
          %v987 = vmul.f32 %v965, 16.0
          %v988 = vsel %vm986, -0.0, %v987
          %v989 = vsel %vm985, nan, %v988
        $region67: #{lm_head_linear_allreduce.1} parent=35
          #allocation30 [shape = 'u8[4096]{0}', space=vmem, size = 0x1000, scoped, tag = 'scoped memory for lm_head_linear_allreduce.1']
          %990 = vst [vmem:[#allocation30] sm:$0xff] %v342
          %s991 = scalar_lea.vmem [#allocation30], 4
          %v992 = vld [vmem:[%s991] sm:$0x3]
          %v993 = vunpack.c.0.f8e4m3b11 %v992
          %v994 = vunpack.c.1.f8e4m3b11 %v992
          %v995 = vunpack.c.2.f8e4m3b11 %v992
          %v996 = vunpack.c.3.f8e4m3b11 %v992
          %v997 = vand.u32 2147483647, %v993
          %vm998 = vcmp.gt.f32.partialorder %v997, 29.0
          %vm999 = vcmp.ne.f32.partialorder %v993, %v993
          %v1000 = vmul.f32 %v993, 16.0
          %v1001 = vsel %vm999, -0.0, %v1000
          %v1002 = vsel %vm998, nan, %v1001
          %v1003 = vand.u32 2147483647, %v994
          %vm1004 = vcmp.gt.f32.partialorder %v1003, 29.0
          %vm1005 = vcmp.ne.f32.partialorder %v994, %v994
          %v1006 = vmul.f32 %v994, 16.0
          %v1007 = vsel %vm1005, -0.0, %v1006
          %v1008 = vsel %vm1004, nan, %v1007
          %v1009 = vand.u32 2147483647, %v995
          %vm1010 = vcmp.gt.f32.partialorder %v1009, 29.0
          %vm1011 = vcmp.ne.f32.partialorder %v995, %v995
          %v1012 = vmul.f32 %v995, 16.0
          %v1013 = vsel %vm1011, -0.0, %v1012
          %v1014 = vsel %vm1010, nan, %v1013
          %v1015 = vand.u32 2147483647, %v996
          %vm1016 = vcmp.gt.f32.partialorder %v1015, 29.0
          %vm1017 = vcmp.ne.f32.partialorder %v996, %v996
          %v1018 = vmul.f32 %v996, 16.0
          %v1019 = vsel %vm1017, -0.0, %v1018
          %v1020 = vsel %vm1016, nan, %v1019
        $region68: #{lm_head_linear_allreduce.1} parent=35
          #allocation31 [shape = 'u8[4096]{0}', space=vmem, size = 0x1000, scoped, tag = 'scoped memory for lm_head_linear_allreduce.1']
          %1021 = vst [vmem:[#allocation31] sm:$0xff] %v341
          %s1022 = scalar_lea.vmem [#allocation31], 6
          %v1023 = vld [vmem:[%s1022] sm:$0x3]
          %v1024 = vunpack.c.0.f8e4m3b11 %v1023
          %v1025 = vunpack.c.1.f8e4m3b11 %v1023
          %v1026 = vunpack.c.2.f8e4m3b11 %v1023
          %v1027 = vunpack.c.3.f8e4m3b11 %v1023
          %v1028 = vand.u32 2147483647, %v1024
          %vm1029 = vcmp.gt.f32.partialorder %v1028, 29.0
          %vm1030 = vcmp.ne.f32.partialorder %v1024, %v1024
          %v1031 = vmul.f32 %v1024, 16.0
          %v1032 = vsel %vm1030, -0.0, %v1031
          %v1033 = vsel %vm1029, nan, %v1032
          %v1034 = vand.u32 2147483647, %v1025
          %vm1035 = vcmp.gt.f32.partialorder %v1034, 29.0
          %vm1036 = vcmp.ne.f32.partialorder %v1025, %v1025
          %v1037 = vmul.f32 %v1025, 16.0
          %v1038 = vsel %vm1036, -0.0, %v1037
          %v1039 = vsel %vm1035, nan, %v1038
          %v1040 = vand.u32 2147483647, %v1026
          %vm1041 = vcmp.gt.f32.partialorder %v1040, 29.0
          %vm1042 = vcmp.ne.f32.partialorder %v1026, %v1026
          %v1043 = vmul.f32 %v1026, 16.0
          %v1044 = vsel %vm1042, -0.0, %v1043
          %v1045 = vsel %vm1041, nan, %v1044
          %v1046 = vand.u32 2147483647, %v1027
          %vm1047 = vcmp.gt.f32.partialorder %v1046, 29.0
          %vm1048 = vcmp.ne.f32.partialorder %v1027, %v1027
          %v1049 = vmul.f32 %v1027, 16.0
          %v1050 = vsel %vm1048, -0.0, %v1049
          %v1051 = vsel %vm1047, nan, %v1050
        $region69: #{lm_head_linear_allreduce.1} parent=35
          #allocation32 [shape = 'u8[4096]{0}', space=vmem, size = 0x1000, scoped, tag = 'scoped memory for lm_head_linear_allreduce.1']
          %1052 = vst [vmem:[#allocation32] sm:$0xff] %v342
          %s1053 = scalar_lea.vmem [#allocation32], 6
          %v1054 = vld [vmem:[%s1053] sm:$0x3]
          %v1055 = vunpack.c.0.f8e4m3b11 %v1054
          %v1056 = vunpack.c.1.f8e4m3b11 %v1054
          %v1057 = vunpack.c.2.f8e4m3b11 %v1054
          %v1058 = vunpack.c.3.f8e4m3b11 %v1054
          %v1059 = vand.u32 2147483647, %v1055
          %vm1060 = vcmp.gt.f32.partialorder %v1059, 29.0
          %vm1061 = vcmp.ne.f32.partialorder %v1055, %v1055
          %v1062 = vmul.f32 %v1055, 16.0
          %v1063 = vsel %vm1061, -0.0, %v1062
          %v1064 = vsel %vm1060, nan, %v1063
          %v1065 = vand.u32 2147483647, %v1056
          %vm1066 = vcmp.gt.f32.partialorder %v1065, 29.0
          %vm1067 = vcmp.ne.f32.partialorder %v1056, %v1056
          %v1068 = vmul.f32 %v1056, 16.0
          %v1069 = vsel %vm1067, -0.0, %v1068
          %v1070 = vsel %vm1066, nan, %v1069
          %v1071 = vand.u32 2147483647, %v1057
          %vm1072 = vcmp.gt.f32.partialorder %v1071, 29.0
          %vm1073 = vcmp.ne.f32.partialorder %v1057, %v1057
          %v1074 = vmul.f32 %v1057, 16.0
          %v1075 = vsel %vm1073, -0.0, %v1074
          %v1076 = vsel %vm1072, nan, %v1075
          %v1077 = vand.u32 2147483647, %v1058
          %vm1078 = vcmp.gt.f32.partialorder %v1077, 29.0
          %vm1079 = vcmp.ne.f32.partialorder %v1058, %v1058
          %v1080 = vmul.f32 %v1058, 16.0
          %v1081 = vsel %vm1079, -0.0, %v1080
          %v1082 = vsel %vm1078, nan, %v1081
        $region70: #{lm_head_linear_allreduce.1} parent=35
          #allocation33 [shape = 'u8[4096]{0}', space=vmem, size = 0x1000, scoped, tag = 'scoped memory for lm_head_linear_allreduce.1']
          %1083 = vst [vmem:[#allocation33] sm:$0xff] %v343
          %v1084 = vld [vmem:[#allocation33] sm:$0x3]
          %v1085 = vunpack.c.0.f8e4m3b11 %v1084
          %v1086 = vunpack.c.1.f8e4m3b11 %v1084
          %v1087 = vunpack.c.2.f8e4m3b11 %v1084
          %v1088 = vunpack.c.3.f8e4m3b11 %v1084
          %v1089 = vand.u32 2147483647, %v1085
          %vm1090 = vcmp.gt.f32.partialorder %v1089, 29.0
          %vm1091 = vcmp.ne.f32.partialorder %v1085, %v1085
          %v1092 = vmul.f32 %v1085, 16.0
          %v1093 = vsel %vm1091, -0.0, %v1092
          %v1094 = vsel %vm1090, nan, %v1093
          %v1095 = vand.u32 2147483647, %v1086
          %vm1096 = vcmp.gt.f32.partialorder %v1095, 29.0
          %vm1097 = vcmp.ne.f32.partialorder %v1086, %v1086
          %v1098 = vmul.f32 %v1086, 16.0
          %v1099 = vsel %vm1097, -0.0, %v1098
          %v1100 = vsel %vm1096, nan, %v1099
          %v1101 = vand.u32 2147483647, %v1087
          %vm1102 = vcmp.gt.f32.partialorder %v1101, 29.0
          %vm1103 = vcmp.ne.f32.partialorder %v1087, %v1087
          %v1104 = vmul.f32 %v1087, 16.0
          %v1105 = vsel %vm1103, -0.0, %v1104
          %v1106 = vsel %vm1102, nan, %v1105
          %v1107 = vand.u32 2147483647, %v1088
          %vm1108 = vcmp.gt.f32.partialorder %v1107, 29.0
          %vm1109 = vcmp.ne.f32.partialorder %v1088, %v1088
          %v1110 = vmul.f32 %v1088, 16.0
          %v1111 = vsel %vm1109, -0.0, %v1110
          %v1112 = vsel %vm1108, nan, %v1111
        $region71: #{lm_head_linear_allreduce.1} parent=35
          #allocation34 [shape = 'u8[4096]{0}', space=vmem, size = 0x1000, scoped, tag = 'scoped memory for lm_head_linear_allreduce.1']
          %1113 = vst [vmem:[#allocation34] sm:$0xff] %v344
          %v1114 = vld [vmem:[#allocation34] sm:$0x3]
          %v1115 = vunpack.c.0.f8e4m3b11 %v1114
          %v1116 = vunpack.c.1.f8e4m3b11 %v1114
          %v1117 = vunpack.c.2.f8e4m3b11 %v1114
          %v1118 = vunpack.c.3.f8e4m3b11 %v1114
          %v1119 = vand.u32 2147483647, %v1115
          %vm1120 = vcmp.gt.f32.partialorder %v1119, 29.0
          %vm1121 = vcmp.ne.f32.partialorder %v1115, %v1115
          %v1122 = vmul.f32 %v1115, 16.0
          %v1123 = vsel %vm1121, -0.0, %v1122
          %v1124 = vsel %vm1120, nan, %v1123
          %v1125 = vand.u32 2147483647, %v1116
          %vm1126 = vcmp.gt.f32.partialorder %v1125, 29.0
          %vm1127 = vcmp.ne.f32.partialorder %v1116, %v1116
          %v1128 = vmul.f32 %v1116, 16.0
          %v1129 = vsel %vm1127, -0.0, %v1128
          %v1130 = vsel %vm1126, nan, %v1129
          %v1131 = vand.u32 2147483647, %v1117
          %vm1132 = vcmp.gt.f32.partialorder %v1131, 29.0
          %vm1133 = vcmp.ne.f32.partialorder %v1117, %v1117
          %v1134 = vmul.f32 %v1117, 16.0
          %v1135 = vsel %vm1133, -0.0, %v1134
          %v1136 = vsel %vm1132, nan, %v1135
          %v1137 = vand.u32 2147483647, %v1118
          %vm1138 = vcmp.gt.f32.partialorder %v1137, 29.0
          %vm1139 = vcmp.ne.f32.partialorder %v1118, %v1118
          %v1140 = vmul.f32 %v1118, 16.0
          %v1141 = vsel %vm1139, -0.0, %v1140
          %v1142 = vsel %vm1138, nan, %v1141
        $region72: #{lm_head_linear_allreduce.1} parent=35
          #allocation35 [shape = 'u8[4096]{0}', space=vmem, size = 0x1000, scoped, tag = 'scoped memory for lm_head_linear_allreduce.1']
          %1143 = vst [vmem:[#allocation35] sm:$0xff] %v343
          %s1144 = scalar_lea.vmem [#allocation35], 2
          %v1145 = vld [vmem:[%s1144] sm:$0x3]
          %v1146 = vunpack.c.0.f8e4m3b11 %v1145
          %v1147 = vunpack.c.1.f8e4m3b11 %v1145
          %v1148 = vunpack.c.2.f8e4m3b11 %v1145
          %v1149 = vunpack.c.3.f8e4m3b11 %v1145
          %v1150 = vand.u32 2147483647, %v1146
          %vm1151 = vcmp.gt.f32.partialorder %v1150, 29.0
          %vm1152 = vcmp.ne.f32.partialorder %v1146, %v1146
          %v1153 = vmul.f32 %v1146, 16.0
          %v1154 = vsel %vm1152, -0.0, %v1153
          %v1155 = vsel %vm1151, nan, %v1154
          %v1156 = vand.u32 2147483647, %v1147
          %vm1157 = vcmp.gt.f32.partialorder %v1156, 29.0
          %vm1158 = vcmp.ne.f32.partialorder %v1147, %v1147
          %v1159 = vmul.f32 %v1147, 16.0
          %v1160 = vsel %vm1158, -0.0, %v1159
          %v1161 = vsel %vm1157, nan, %v1160
          %v1162 = vand.u32 2147483647, %v1148
          %vm1163 = vcmp.gt.f32.partialorder %v1162, 29.0
          %vm1164 = vcmp.ne.f32.partialorder %v1148, %v1148
          %v1165 = vmul.f32 %v1148, 16.0
          %v1166 = vsel %vm1164, -0.0, %v1165
          %v1167 = vsel %vm1163, nan, %v1166
          %v1168 = vand.u32 2147483647, %v1149
          %vm1169 = vcmp.gt.f32.partialorder %v1168, 29.0
          %vm1170 = vcmp.ne.f32.partialorder %v1149, %v1149
          %v1171 = vmul.f32 %v1149, 16.0
          %v1172 = vsel %vm1170, -0.0, %v1171
          %v1173 = vsel %vm1169, nan, %v1172
        $region73: #{lm_head_linear_allreduce.1} parent=35
          #allocation36 [shape = 'u8[4096]{0}', space=vmem, size = 0x1000, scoped, tag = 'scoped memory for lm_head_linear_allreduce.1']
          %1174 = vst [vmem:[#allocation36] sm:$0xff] %v344
          %s1175 = scalar_lea.vmem [#allocation36], 2
          %v1176 = vld [vmem:[%s1175] sm:$0x3]
          %v1177 = vunpack.c.0.f8e4m3b11 %v1176
          %v1178 = vunpack.c.1.f8e4m3b11 %v1176
          %v1179 = vunpack.c.2.f8e4m3b11 %v1176
          %v1180 = vunpack.c.3.f8e4m3b11 %v1176
          %v1181 = vand.u32 2147483647, %v1177
          %vm1182 = vcmp.gt.f32.partialorder %v1181, 29.0
          %vm1183 = vcmp.ne.f32.partialorder %v1177, %v1177
          %v1184 = vmul.f32 %v1177, 16.0
          %v1185 = vsel %vm1183, -0.0, %v1184
          %v1186 = vsel %vm1182, nan, %v1185
          %v1187 = vand.u32 2147483647, %v1178
          %vm1188 = vcmp.gt.f32.partialorder %v1187, 29.0
          %vm1189 = vcmp.ne.f32.partialorder %v1178, %v1178
          %v1190 = vmul.f32 %v1178, 16.0
          %v1191 = vsel %vm1189, -0.0, %v1190
          %v1192 = vsel %vm1188, nan, %v1191
          %v1193 = vand.u32 2147483647, %v1179
          %vm1194 = vcmp.gt.f32.partialorder %v1193, 29.0
          %vm1195 = vcmp.ne.f32.partialorder %v1179, %v1179
          %v1196 = vmul.f32 %v1179, 16.0
          %v1197 = vsel %vm1195, -0.0, %v1196
          %v1198 = vsel %vm1194, nan, %v1197
          %v1199 = vand.u32 2147483647, %v1180
          %vm1200 = vcmp.gt.f32.partialorder %v1199, 29.0
          %vm1201 = vcmp.ne.f32.partialorder %v1180, %v1180
          %v1202 = vmul.f32 %v1180, 16.0
          %v1203 = vsel %vm1201, -0.0, %v1202
          %v1204 = vsel %vm1200, nan, %v1203
        $region74: #{lm_head_linear_allreduce.1} parent=35
          #allocation37 [shape = 'u8[4096]{0}', space=vmem, size = 0x1000, scoped, tag = 'scoped memory for lm_head_linear_allreduce.1']
          %1205 = vst [vmem:[#allocation37] sm:$0xff] %v343
          %s1206 = scalar_lea.vmem [#allocation37], 4
          %v1207 = vld [vmem:[%s1206] sm:$0x3]
          %v1208 = vunpack.c.0.f8e4m3b11 %v1207
          %v1209 = vunpack.c.1.f8e4m3b11 %v1207
          %v1210 = vunpack.c.2.f8e4m3b11 %v1207
          %v1211 = vunpack.c.3.f8e4m3b11 %v1207
          %v1212 = vand.u32 2147483647, %v1208
          %vm1213 = vcmp.gt.f32.partialorder %v1212, 29.0
          %vm1214 = vcmp.ne.f32.partialorder %v1208, %v1208
          %v1215 = vmul.f32 %v1208, 16.0
          %v1216 = vsel %vm1214, -0.0, %v1215
          %v1217 = vsel %vm1213, nan, %v1216
          %v1218 = vand.u32 2147483647, %v1209
          %vm1219 = vcmp.gt.f32.partialorder %v1218, 29.0
          %vm1220 = vcmp.ne.f32.partialorder %v1209, %v1209
          %v1221 = vmul.f32 %v1209, 16.0
          %v1222 = vsel %vm1220, -0.0, %v1221
          %v1223 = vsel %vm1219, nan, %v1222
          %v1224 = vand.u32 2147483647, %v1210
          %vm1225 = vcmp.gt.f32.partialorder %v1224, 29.0
          %vm1226 = vcmp.ne.f32.partialorder %v1210, %v1210
          %v1227 = vmul.f32 %v1210, 16.0
          %v1228 = vsel %vm1226, -0.0, %v1227
          %v1229 = vsel %vm1225, nan, %v1228
          %v1230 = vand.u32 2147483647, %v1211
          %vm1231 = vcmp.gt.f32.partialorder %v1230, 29.0
          %vm1232 = vcmp.ne.f32.partialorder %v1211, %v1211
          %v1233 = vmul.f32 %v1211, 16.0
          %v1234 = vsel %vm1232, -0.0, %v1233
          %v1235 = vsel %vm1231, nan, %v1234
        $region75: #{lm_head_linear_allreduce.1} parent=35
          #allocation38 [shape = 'u8[4096]{0}', space=vmem, size = 0x1000, scoped, tag = 'scoped memory for lm_head_linear_allreduce.1']
          %1236 = vst [vmem:[#allocation38] sm:$0xff] %v344
          %s1237 = scalar_lea.vmem [#allocation38], 4
          %v1238 = vld [vmem:[%s1237] sm:$0x3]
          %v1239 = vunpack.c.0.f8e4m3b11 %v1238
          %v1240 = vunpack.c.1.f8e4m3b11 %v1238
          %v1241 = vunpack.c.2.f8e4m3b11 %v1238
          %v1242 = vunpack.c.3.f8e4m3b11 %v1238
          %v1243 = vand.u32 2147483647, %v1239
          %vm1244 = vcmp.gt.f32.partialorder %v1243, 29.0
          %vm1245 = vcmp.ne.f32.partialorder %v1239, %v1239
          %v1246 = vmul.f32 %v1239, 16.0
          %v1247 = vsel %vm1245, -0.0, %v1246
          %v1248 = vsel %vm1244, nan, %v1247
          %v1249 = vand.u32 2147483647, %v1240
          %vm1250 = vcmp.gt.f32.partialorder %v1249, 29.0
          %vm1251 = vcmp.ne.f32.partialorder %v1240, %v1240
          %v1252 = vmul.f32 %v1240, 16.0
          %v1253 = vsel %vm1251, -0.0, %v1252
          %v1254 = vsel %vm1250, nan, %v1253
          %v1255 = vand.u32 2147483647, %v1241
          %vm1256 = vcmp.gt.f32.partialorder %v1255, 29.0
          %vm1257 = vcmp.ne.f32.partialorder %v1241, %v1241
          %v1258 = vmul.f32 %v1241, 16.0
          %v1259 = vsel %vm1257, -0.0, %v1258
          %v1260 = vsel %vm1256, nan, %v1259
          %v1261 = vand.u32 2147483647, %v1242
          %vm1262 = vcmp.gt.f32.partialorder %v1261, 29.0
          %vm1263 = vcmp.ne.f32.partialorder %v1242, %v1242
          %v1264 = vmul.f32 %v1242, 16.0
          %v1265 = vsel %vm1263, -0.0, %v1264
          %v1266 = vsel %vm1262, nan, %v1265
        $region76: #{lm_head_linear_allreduce.1} parent=35
          #allocation39 [shape = 'u8[4096]{0}', space=vmem, size = 0x1000, scoped, tag = 'scoped memory for lm_head_linear_allreduce.1']
          %1267 = vst [vmem:[#allocation39] sm:$0xff] %v343
          %s1268 = scalar_lea.vmem [#allocation39], 6
          %v1269 = vld [vmem:[%s1268] sm:$0x3]
          %v1270 = vunpack.c.0.f8e4m3b11 %v1269
          %v1271 = vunpack.c.1.f8e4m3b11 %v1269
          %v1272 = vunpack.c.2.f8e4m3b11 %v1269
          %v1273 = vunpack.c.3.f8e4m3b11 %v1269
          %v1274 = vand.u32 2147483647, %v1270
          %vm1275 = vcmp.gt.f32.partialorder %v1274, 29.0
          %vm1276 = vcmp.ne.f32.partialorder %v1270, %v1270
          %v1277 = vmul.f32 %v1270, 16.0
          %v1278 = vsel %vm1276, -0.0, %v1277
          %v1279 = vsel %vm1275, nan, %v1278
          %v1280 = vand.u32 2147483647, %v1271
          %vm1281 = vcmp.gt.f32.partialorder %v1280, 29.0
          %vm1282 = vcmp.ne.f32.partialorder %v1271, %v1271
          %v1283 = vmul.f32 %v1271, 16.0
          %v1284 = vsel %vm1282, -0.0, %v1283
          %v1285 = vsel %vm1281, nan, %v1284
          %v1286 = vand.u32 2147483647, %v1272
          %vm1287 = vcmp.gt.f32.partialorder %v1286, 29.0
          %vm1288 = vcmp.ne.f32.partialorder %v1272, %v1272
          %v1289 = vmul.f32 %v1272, 16.0
          %v1290 = vsel %vm1288, -0.0, %v1289
          %v1291 = vsel %vm1287, nan, %v1290
          %v1292 = vand.u32 2147483647, %v1273
          %vm1293 = vcmp.gt.f32.partialorder %v1292, 29.0
          %vm1294 = vcmp.ne.f32.partialorder %v1273, %v1273
          %v1295 = vmul.f32 %v1273, 16.0
          %v1296 = vsel %vm1294, -0.0, %v1295
          %v1297 = vsel %vm1293, nan, %v1296
        $region77: #{lm_head_linear_allreduce.1} parent=35
          #allocation40 [shape = 'u8[4096]{0}', space=vmem, size = 0x1000, scoped, tag = 'scoped memory for lm_head_linear_allreduce.1']
          %1298 = vst [vmem:[#allocation40] sm:$0xff] %v344
          %s1299 = scalar_lea.vmem [#allocation40], 6
          %v1300 = vld [vmem:[%s1299] sm:$0x3]
          %v1301 = vunpack.c.0.f8e4m3b11 %v1300
          %v1302 = vunpack.c.1.f8e4m3b11 %v1300
          %v1303 = vunpack.c.2.f8e4m3b11 %v1300
          %v1304 = vunpack.c.3.f8e4m3b11 %v1300
          %v1305 = vand.u32 2147483647, %v1301
          %vm1306 = vcmp.gt.f32.partialorder %v1305, 29.0
          %vm1307 = vcmp.ne.f32.partialorder %v1301, %v1301
          %v1308 = vmul.f32 %v1301, 16.0
          %v1309 = vsel %vm1307, -0.0, %v1308
          %v1310 = vsel %vm1306, nan, %v1309
          %v1311 = vand.u32 2147483647, %v1302
          %vm1312 = vcmp.gt.f32.partialorder %v1311, 29.0
          %vm1313 = vcmp.ne.f32.partialorder %v1302, %v1302
          %v1314 = vmul.f32 %v1302, 16.0
          %v1315 = vsel %vm1313, -0.0, %v1314
          %v1316 = vsel %vm1312, nan, %v1315
          %v1317 = vand.u32 2147483647, %v1303
          %vm1318 = vcmp.gt.f32.partialorder %v1317, 29.0
          %vm1319 = vcmp.ne.f32.partialorder %v1303, %v1303
          %v1320 = vmul.f32 %v1303, 16.0
          %v1321 = vsel %vm1319, -0.0, %v1320
          %v1322 = vsel %vm1318, nan, %v1321
          %v1323 = vand.u32 2147483647, %v1304
          %vm1324 = vcmp.gt.f32.partialorder %v1323, 29.0
          %vm1325 = vcmp.ne.f32.partialorder %v1304, %v1304
          %v1326 = vmul.f32 %v1304, 16.0
          %v1327 = vsel %vm1325, -0.0, %v1326
          %v1328 = vsel %vm1324, nan, %v1327
        %v1329 = vpack.c.bf16 %v417, %v356
        %v1330 = vpack.c.bf16 %v448, %v386
        %v1331 = vpack.c.bf16 %v541, %v479
        %v1332 = vpack.c.bf16 %v572, %v510
        %v1333 = vpack.c.bf16 %v663, %v602
        %v1334 = vpack.c.bf16 %v694, %v632
        %v1335 = vpack.c.bf16 %v787, %v725
        %v1336 = vpack.c.bf16 %v818, %v756
        %v1337 = vpack.c.bf16 %v909, %v848
        %v1338 = vpack.c.bf16 %v940, %v878
        %v1339 = vpack.c.bf16 %v1033, %v971
        %v1340 = vpack.c.bf16 %v1064, %v1002
        %v1341 = vpack.c.bf16 %v1155, %v1094
        %v1342 = vpack.c.bf16 %v1186, %v1124
        %v1343 = vpack.c.bf16 %v1279, %v1217
        %v1344 = vpack.c.bf16 %v1310, %v1248
        %1345 = vmatpush.bf16.msra.mxu0 %v1343
        %1346 = vmatpush.bf16.msra.mxu0 %v1341
        %1347 = vmatpush.bf16.msra.mxu0 %v1339
        %1348 = vmatpush.bf16.msra.mxu0 %v1337
        %1349 = vmatpush.bf16.msra.mxu0 %v1335
        %1350 = vmatpush.bf16.msra.mxu0 %v1333
        %1351 = vmatpush.bf16.msra.mxu0 %v1331
        %1352 = vmatpush.bf16.msra.mxu0 %v1329
        %1353 = vmatmul.bf16.gmra.mxu0 %v336
        %v1354 = vpop.f32.mrf.mxu0
        %v1355 = vadd.f32 0.0, %v1354
        %v1356 = vpop.f32.mrf.mxu0
        %1357 = vdwg.mxu0
        %1358 = vmatpush.bf16.msra.mxu0 %v1344
        %1359 = vmatpush.bf16.msra.mxu0 %v1342
        %1360 = vmatpush.bf16.msra.mxu0 %v1340
        %1361 = vmatpush.bf16.msra.mxu0 %v1338
        %1362 = vmatpush.bf16.msra.mxu0 %v1336
        %1363 = vmatpush.bf16.msra.mxu0 %v1334
        %1364 = vmatpush.bf16.msra.mxu0 %v1332
        %1365 = vmatpush.bf16.msra.mxu0 %v1330
        %1366 = vmatmul.bf16.gmra.mxu0 %v336
        %v1367 = vpop.f32.mrf.mxu0
        %v1368 = vadd.f32 0.0, %v1367
        %v1369 = vpop.f32.mrf.mxu0
        %1370 = vdwg.mxu0
        %s1371 = sld [smem:[#allocation6 + $0x1]]
        %v1372 = vstv %s1371
        %v1373 = vmul.f32 %v1355, %v1372
        %v1374 = vmul.f32 %v1368, %v1372
        %v1375 = vpack.c.bf16 %v1374, %v1373
        %v1376 = vld [vmem:[%s284] sm:$0x3]
        %1378 = vst [vmem:[#allocation1] ss:$9 sm:$0xff] %v1376
        %v1379 = vld [vmem:[#allocation1] sm:$0xff]
        %v1380 = vld [vmem:[#allocation1 + $0x9] sm:$0xff]
        %v1381 = vpack.i.b16 %v1379, %v1379
        %v1383 = vperm.slane %v1381, 0
        %v1384 = vpack.i.b16 %v1380, %v1380
        %v1386 = vperm.slane %v1384, 0
        %v1387 = vunpack.c.l.bf16 %v1375
        %v1388 = vunpack.c.h.bf16 %v1375
        %v1389 = vunpack.c.l.bf16 %v1383
        %v1390 = vunpack.c.l.bf16 %v1386
        %v1391 = vadd.f32 %v1387, %v1389
        %v1392 = vadd.f32 %v1388, %v1390
        %v1393 = vpack.c.bf16 %v1392, %v1391
        %1394 = vst [vmem:[%s274] sm:$0xff] %v1393
        %s1395 = sand.u32 %s143, 1
        %s1396 = scalar_lea.sflag [#allocation4], %s1395
        %s1397 = sand.u32 %s143, 1
        %s1398 = smul.addr %s1397, 8
        %s1399 = scalar_lea.vmem [#allocation7], %s1398
        // Predicated region
        $region78: #{lm_head_linear_allreduce.1} parent=35 // pred_check
          %p1400 = pneg %p153
        $region79: #{lm_head_linear_allreduce.1} parent=35 // pred_check_branch
          %1402 = sbr.rel (%p1400) target = $region81
        $region80: #{lm_head_linear_allreduce.1} parent=35 // pred_region
          %s1403 = smul.u32 2, %s26
          %1405 = vsyncadd %s1396, 0
          %s1406 = smul.addr %s27, 8
          %s1407 = sadd.s32 %s1403, %s1406
          %s1408 = smul.addr %s1407, 4
          %s1409 = scalar_lea.hbm %s4, %s1408
          %s1411 = sshll.u32 %s1399, 4
          %s1412 = int_to_ptr.vmem [resolvable:$true] %s1411
          %s1413 = sshll.u32 %s1409, 4
          %s1414 = int_to_ptr.hbm [resolvable:$true] %s1413
          %1416 = dma.vmem_to_hbm [thread:$0]  %s1412, 128, %s1414, %s1396
        $region81: #{lm_head_linear_allreduce.1} parent=35 // pred_fallthru
          _
      $region36: #{lm_head_linear_allreduce.1} parent=5 // pred_fallthru
        _
      %p1417 = scmp.le.s32.totalorder 2, %s17
      // Predicated region
      $region82: #{lm_head_linear_allreduce.1} parent=5 // pred_check
        %p1418 = pneg %p1417
      $region83: #{lm_head_linear_allreduce.1} parent=5 // pred_check_branch
        %1420 = sbr.rel (%p1418) target = $region85
      $region84: #{lm_head_linear_allreduce.1} parent=5 // pred_region
        %s1421 = ssub.s32 %s17, 2
        // Predicated region
        $region86: #{lm_head_linear_allreduce.1} parent=84 // pred_check
          %p1422 = pneg %p159
        $region87: #{lm_head_linear_allreduce.1} parent=84 // pred_check_branch
          %1424 = sbr.rel (%p1422) target = $region89
        $region88: #{lm_head_linear_allreduce.1} parent=84 // pred_region
          %s1425 = sand.u32 %s144, 1
          %s1426 = scalar_lea.sflag [#allocation4], %s1425
          %s1427 = sand.u32 %s144, 1
          %s1428 = smul.addr %s1427, 8
          %s1429 = scalar_lea.vmem [#allocation7], %s1428
          %1431 = dma.done %s1426, 128
        $region89: #{lm_head_linear_allreduce.1} parent=84 // pred_fallthru
          _
      $region85: #{lm_head_linear_allreduce.1} parent=5 // pred_fallthru
        _
    $region6: #{lm_head_linear_allreduce.1} parent=1 // loop_footer
      %s21 = sadd.s32 1, %s17
    $region7: #{lm_head_linear_allreduce.1} parent=1 // loop_footer_branch
      %16 = sbr.rel target = $region3
    $region8: #{lm_head_linear_allreduce.1} parent=1 // loop_exit
      _
    %1432 = vsyncpa [#allocation3], 1
    %s1433 = scalar_lea.sflag [#allocation3], 1
    %1434 = vsyncpa %s1433, 1
    %1435 = vsyncpa [#allocation4], 1
    %s1436 = scalar_lea.sflag [#allocation4], 1
    %1437 = vsyncpa %s1436, 1
    %1438 = vsyncpa [#allocation5], 1
    %s1439 = scalar_lea.sflag [#allocation5], 1
    %1440 = vsyncpa %s1439, 1

// kernel: lm_head_linear_allreduce.1
$region0: #{lm_head_linear_allreduce.1}
  #allocation0 [shape = 'u32[]', space=smem, size = 0x4, offset = 0x4, fixed_abs, tag = 'smem constant byte address 0x4 - core index']
  #allocation1 [shape = 'u32[72,128]{1,0:T(1,128)}', space=vmem, size = 0x9000, scoped, tag = 'internal scratch']
  %s0 = inlined_call_operand.vmem [shape: bf16[16,128], index: 0, kind: input, shape index: {}]
  %s1 = inlined_call_operand.vmem [shape: bf16[128,1024], index: 1, kind: input, shape index: {}]
  %s2 = inlined_call_operand.vmem [shape: f32[2], index: 2, kind: input, shape index: {}]
  %s3 = inlined_call_operand.vmem [shape: bf16[1,1024], index: 3, kind: input, shape index: {}]
  %s4 = inlined_call_operand.hbm [shape: bf16[16,1024], index: 4, kind: output, shape index: {}]
  %s5 = sld [smem:[#allocation0]]
  $region91: #{lm_head_linear_allreduce.1} parent=0
    _
  %s7 = ssub.s32 1, %s5
  %s8 = scalar_select 0, %s7, %s5
  $region1: #{lm_head_linear_allreduce.1} parent=0
    #allocation2 [shape = 'u8[131072]{0}', space=vmem, size = 0x20000, scoped, tag = 'input window, operand 1']
    #allocation3 [shape = 'u8[512]{0}', space=smem, size = 0x200, scoped, tag = 'input window, operand 2, single buffered']
    #allocation4 [shape = 's32[2]{0}', space=sflag, size = 0x8, scoped, tag = 'scoped memory for lm_head_linear_allreduce.1']
    #allocation5 [shape = 's32[2]{0}', space=sflag, size = 0x8, scoped, tag = 'scoped memory for lm_head_linear_allreduce.1']
    #allocation6 [shape = 'u8[8192]{0}', space=vmem, size = 0x2000, scoped, tag = 'output window, operand 0']
    %9 = vsyncpa [#allocation5], 0
    %10 = vsyncpa [#allocation4], 0
    %s11 = scalar_lea.sflag [#allocation4], 1
    %12 = vsyncpa %s11, 0
    loop: start=0, step=1, limit=10
    $region2: #{lm_head_linear_allreduce.1} parent=1 // loop_pre_header
      _
    $region3: #{lm_head_linear_allreduce.1} parent=1 // loop_header
      %s14 = sphi 0, %s18
      %p15 = scmp.ge.s32.totalorder %s14, 10
      %s21 = sphi 0, %s33
      %s22 = sphi 0, %s29
      %s23 = sphi 0, %s21
      %s24 = sphi 0, %s22
      %s25 = sphi 0, %s23
      %s26 = sphi 0, %s24
      %s36 = sphi 0, %s38
      %s39 = sphi 0, %s36
      %s40 = sphi 0, %s39
      %s56 = sphi 0, %s40
      %s62 = sphi 0, %s64
      %s65 = sphi 0, %s62
      %s66 = sphi 0, %s65
      %s82 = sphi 0, %s66
      %s86 = sphi 0, %s86
      %s88 = sphi 0, %s86
      %s89 = sphi 0, %s88
      %s103 = sphi 0, %s89
      %s109 = sphi 0, %s111
      %s112 = sphi 0, %s109
      %s113 = sphi 0, %s112
      %s129 = sphi 0, %s113
      %s137 = sphi 0, %s139
      %s140 = sphi 0, %s137
      %s141 = sphi 0, %s140
      %s157 = sphi 0, %s141
    $region4: #{lm_head_linear_allreduce.1} parent=1 // loop_header_branch
      %17 = sbr.rel (%p15) target = $region8
    $region5: #{lm_head_linear_allreduce.1} parent=1 // loop_body
      %s19 = ssub.s32 %s14, 1
      %s20 = ssub.s32 %s14, 2
      %s27 = sadd.s32 1, %s22
      %p28 = scmp.ge.s32.totalorder %s27, 2
      %s29 = scalar_select %p28, 0, %s27
      %s30 = sadd.s32 1, %s21
      %s31 = scalar_select %p28, %s30, %s21
      %p32 = scmp.ge.s32.totalorder %s31, 4
      %s33 = scalar_select %p32, 0, %s31
      %s34 = ssub.s32 %s22, %s29
      %p35 = scmp.eq.s32.totalorder %s34, 0
      %s37 = sadd.s32 %s36, 1
      %s38 = scalar_select %p35, %s36, %s37
      %p41 = pneg %p35
      %p42 = scmp.eq.s32.totalorder %s14, 7
      %p43 = por %p41, %p42
      %p44 = scmp.ne.s32.totalorder %s36, %s39
      %p45 = scmp.eq.s32.totalorder %s14, 0
      %p46 = por %p44, %p45
      %p47 = scmp.ne.s32.totalorder %s36, %s39
      %p48 = scmp.eq.s32.totalorder %s19, 7
      %p49 = por %p47, %p48
      %p50 = scmp.ne.s32.totalorder %s39, %s40
      %p51 = scmp.eq.s32.totalorder %s19, 0
      %p52 = por %p50, %p51
      %p53 = scmp.ne.s32.totalorder %s39, %s40
      %p54 = scmp.eq.s32.totalorder %s20, 7
      %p55 = por %p53, %p54
      %p57 = scmp.ne.s32.totalorder %s40, %s56
      %p58 = scmp.eq.s32.totalorder %s20, 0
      %p59 = por %p57, %p58
      %s60 = ssub.s32 %s21, %s33
      %p61 = scmp.eq.s32.totalorder %s60, 0
      %s63 = sadd.s32 %s62, 1
      %s64 = scalar_select %p61, %s62, %s63
      %p67 = pneg %p61
      %p68 = scmp.eq.s32.totalorder %s14, 7
      %p69 = por %p67, %p68
      %p70 = scmp.ne.s32.totalorder %s62, %s65
      %p71 = scmp.eq.s32.totalorder %s14, 0
      %p72 = por %p70, %p71
      %p73 = scmp.ne.s32.totalorder %s62, %s65
      %p74 = scmp.eq.s32.totalorder %s19, 7
      %p75 = por %p73, %p74
      %p76 = scmp.ne.s32.totalorder %s65, %s66
      %p77 = scmp.eq.s32.totalorder %s19, 0
      %p78 = por %p76, %p77
      %p79 = scmp.ne.s32.totalorder %s65, %s66
      %p80 = scmp.eq.s32.totalorder %s20, 7
      %p81 = por %p79, %p80
      %p83 = scmp.ne.s32.totalorder %s66, %s82
      %p84 = scmp.eq.s32.totalorder %s20, 0
      %p85 = por %p83, %p84
      %s87 = sadd.s32 %s86, 1
      %p90 = scmp.eq.s32.totalorder %s14, 7
      %p91 = scmp.ne.s32.totalorder %s86, %s88
      %p92 = scmp.eq.s32.totalorder %s14, 0
      %p93 = por %p91, %p92
      %p94 = scmp.ne.s32.totalorder %s86, %s88
      %p95 = scmp.eq.s32.totalorder %s19, 7
      %p96 = por %p94, %p95
      %p97 = scmp.ne.s32.totalorder %s88, %s89
      %p98 = scmp.eq.s32.totalorder %s19, 0
      %p99 = por %p97, %p98
      %p100 = scmp.ne.s32.totalorder %s88, %s89
      %p101 = scmp.eq.s32.totalorder %s20, 7
      %p102 = por %p100, %p101
      %p104 = scmp.ne.s32.totalorder %s89, %s103
      %p105 = scmp.eq.s32.totalorder %s20, 0
      %p106 = por %p104, %p105
      %s107 = ssub.s32 %s21, %s33
      %p108 = scmp.eq.s32.totalorder %s107, 0
      %s110 = sadd.s32 %s109, 1
      %s111 = scalar_select %p108, %s109, %s110
      %p114 = pneg %p108
      %p115 = scmp.eq.s32.totalorder %s14, 7
      %p116 = por %p114, %p115
      %p117 = scmp.ne.s32.totalorder %s109, %s112
      %p118 = scmp.eq.s32.totalorder %s14, 0
      %p119 = por %p117, %p118
      %p120 = scmp.ne.s32.totalorder %s109, %s112
      %p121 = scmp.eq.s32.totalorder %s19, 7
      %p122 = por %p120, %p121
      %p123 = scmp.ne.s32.totalorder %s112, %s113
      %p124 = scmp.eq.s32.totalorder %s19, 0
      %p125 = por %p123, %p124
      %p126 = scmp.ne.s32.totalorder %s112, %s113
      %p127 = scmp.eq.s32.totalorder %s20, 7
      %p128 = por %p126, %p127
      %p130 = scmp.ne.s32.totalorder %s113, %s129
      %p131 = scmp.eq.s32.totalorder %s20, 0
      %p132 = por %p130, %p131
      %s133 = ssub.s32 %s22, %s29
      %s134 = ssub.s32 %s21, %s33
      %s135 = sor.u32 %s133, %s134
      %p136 = scmp.eq.s32.totalorder %s135, 0
      %s138 = sadd.s32 %s137, 1
      %s139 = scalar_select %p136, %s137, %s138
      %p142 = pneg %p136
      %p143 = scmp.eq.s32.totalorder %s14, 7
      %p144 = por %p142, %p143
      %p145 = scmp.ne.s32.totalorder %s137, %s140
      %p146 = scmp.eq.s32.totalorder %s14, 0
      %p147 = por %p145, %p146
      %p148 = scmp.ne.s32.totalorder %s137, %s140
      %p149 = scmp.eq.s32.totalorder %s19, 7
      %p150 = por %p148, %p149
      %p151 = scmp.ne.s32.totalorder %s140, %s141
      %p152 = scmp.eq.s32.totalorder %s19, 0
      %p153 = por %p151, %p152
      %p154 = scmp.ne.s32.totalorder %s140, %s141
      %p155 = scmp.eq.s32.totalorder %s20, 7
      %p156 = por %p154, %p155
      %p158 = scmp.ne.s32.totalorder %s141, %s157
      %p159 = scmp.eq.s32.totalorder %s20, 0
      %p160 = por %p158, %p159
      %p161 = scmp.le.s32.totalorder 1, %s14
      %p162 = scmp.lt.s32.totalorder %s14, 9
      %p163 = pnand %p161, %p162
      %p164 = pneg %p163
      // Predicated region
      $region9: #{lm_head_linear_allreduce.1} parent=5 // pred_check
        _
      $region10: #{lm_head_linear_allreduce.1} parent=5 // pred_check_branch
        %166 = sbr.rel (%p163) target = $region12
      $region11: #{lm_head_linear_allreduce.1} parent=5 // pred_region
        %s167 = ssub.s32 %s14, 1
        // Predicated region
        $region13: #{lm_head_linear_allreduce.1} parent=11 // pred_check
          %p168 = pneg %p99
        $region14: #{lm_head_linear_allreduce.1} parent=11 // pred_check_branch
          %170 = sbr.rel (%p168) target = $region16
        $region15: #{lm_head_linear_allreduce.1} parent=11 // pred_region
          %172 = vsyncadd [#allocation5], 0
          %s174 = sshll.u32 %s2, 4
          %s175 = int_to_ptr.vmem [resolvable:$true] %s174
          %177 = dma.vmem_to_smem %s175, 16, [#allocation3], [#allocation5]
        $region16: #{lm_head_linear_allreduce.1} parent=11 // pred_fallthru
          _
      $region12: #{lm_head_linear_allreduce.1} parent=5 // pred_fallthru
        _
      %p178 = scmp.lt.s32.totalorder %s14, 8
      // Predicated region
      $region17: #{lm_head_linear_allreduce.1} parent=5 // pred_check
        %p179 = pneg %p178
      $region18: #{lm_head_linear_allreduce.1} parent=5 // pred_check_branch
        %181 = sbr.rel (%p179) target = $region20
      $region19: #{lm_head_linear_allreduce.1} parent=5 // pred_region
        // Predicated region
        $region21: #{lm_head_linear_allreduce.1} parent=19 // pred_check
          %p182 = pneg %p46
        $region22: #{lm_head_linear_allreduce.1} parent=19 // pred_check_branch
          %184 = sbr.rel (%p182) target = $region24
        $region23: #{lm_head_linear_allreduce.1} parent=19 // pred_region
          %p185 = scmp.lt.s32.totalorder %s22, 1
          %s186 = scalar_select %p185, %s22, 1
          %s187 = smul.addr %s186, 4
          %s188 = scalar_lea.vmem %s0, %s187
        $region24: #{lm_head_linear_allreduce.1} parent=19 // pred_fallthru
          _
        // Predicated region
        $region25: #{lm_head_linear_allreduce.1} parent=19 // pred_check
          %p189 = pneg %p72
        $region26: #{lm_head_linear_allreduce.1} parent=19 // pred_check_branch
          %191 = sbr.rel (%p189) target = $region28
        $region27: #{lm_head_linear_allreduce.1} parent=19 // pred_region
          %s192 = sand.u32 %s62, 1
          %s193 = sand.u32 %s62, 1
          %s194 = smul.addr %s193, 128
          %s195 = scalar_lea.vmem [#allocation2], %s194
          %s196 = smul.u32 2, %s21
          %s197 = smul.addr %s196, 4
          %s198 = scalar_lea.vmem %s1, %s197
          // Predicated region
          $region29: #{lm_head_linear_allreduce.1} parent=27 // pred_check
            _
          $region30: #{lm_head_linear_allreduce.1} parent=27 // pred_check_branch
            %200 = sbr.rel (0) target = $region32
          $region31: #{lm_head_linear_allreduce.1} parent=27 // pred_region
            // Predicated region
            $region33: #{lm_head_linear_allreduce.1} parent=31 // pred_check
              _
            $region34: #{lm_head_linear_allreduce.1} parent=31 // pred_check_branch
              %202 = sbr.rel (0) target = $region36
            $region35: #{lm_head_linear_allreduce.1} parent=31 // pred_region
              // Predicated region
              $region48: #{lm_head_linear_allreduce.1} parent=35 // pred_check
                _
              $region49: #{lm_head_linear_allreduce.1} parent=35 // pred_check_branch
                %248 = sbr.rel (0) target = $region51
              $region50: #{lm_head_linear_allreduce.1} parent=35 // pred_region
                loop: start=0, step=1, limit=1
                $region52: #{lm_head_linear_allreduce.1} parent=50 // loop_pre_header
                  _
                $region53: #{lm_head_linear_allreduce.1} parent=50 // loop_header
                  %s250 = sphi 0, %s254
                  %p251 = scmp.ge.s32.totalorder %s250, 1
                  %s255 = sphi %s198, %s198
                  %s256 = sphi %s195, %s195
                $region54: #{lm_head_linear_allreduce.1} parent=50 // loop_header_branch
                  %253 = sbr.rel (%p251) target = $region58
                $region55: #{lm_head_linear_allreduce.1} parent=50 // loop_body
                  %v257 = vld [vmem:[%s255] sm:$0xff]
                  %258 = vst [vmem:[%s256] sm:$0xff] %v257
                  %v259 = vld [vmem:[%s255 + $0x20] sm:$0xff]
                  %260 = vst [vmem:[%s256 + $0x8] sm:$0xff] %v259
                  %v261 = vld [vmem:[%s255 + $0x40] sm:$0xff]
                  %262 = vst [vmem:[%s256 + $0x10] sm:$0xff] %v261
                  %v263 = vld [vmem:[%s255 + $0x60] sm:$0xff]
                  %264 = vst [vmem:[%s256 + $0x18] sm:$0xff] %v263
                  %v265 = vld [vmem:[%s255 + $0x80] sm:$0xff]
                  %266 = vst [vmem:[%s256 + $0x20] sm:$0xff] %v265
                  %v267 = vld [vmem:[%s255 + $0xa0] sm:$0xff]
                  %268 = vst [vmem:[%s256 + $0x28] sm:$0xff] %v267
                  %v269 = vld [vmem:[%s255 + $0xc0] sm:$0xff]
                  %270 = vst [vmem:[%s256 + $0x30] sm:$0xff] %v269
                  %v271 = vld [vmem:[%s255 + $0xe0] sm:$0xff]
                  %272 = vst [vmem:[%s256 + $0x38] sm:$0xff] %v271
                  %v273 = vld [vmem:[%s255 + $0x100] sm:$0xff]
                  %274 = vst [vmem:[%s256 + $0x40] sm:$0xff] %v273
                  %v275 = vld [vmem:[%s255 + $0x120] sm:$0xff]
                  %276 = vst [vmem:[%s256 + $0x48] sm:$0xff] %v275
                  %v277 = vld [vmem:[%s255 + $0x140] sm:$0xff]
                  %278 = vst [vmem:[%s256 + $0x50] sm:$0xff] %v277
                  %v279 = vld [vmem:[%s255 + $0x160] sm:$0xff]
                  %280 = vst [vmem:[%s256 + $0x58] sm:$0xff] %v279
                  %v281 = vld [vmem:[%s255 + $0x180] sm:$0xff]
                  %282 = vst [vmem:[%s256 + $0x60] sm:$0xff] %v281
                  %v283 = vld [vmem:[%s255 + $0x1a0] sm:$0xff]
                  %284 = vst [vmem:[%s256 + $0x68] sm:$0xff] %v283
                  %v285 = vld [vmem:[%s255 + $0x1c0] sm:$0xff]
                  %286 = vst [vmem:[%s256 + $0x70] sm:$0xff] %v285
                  %v287 = vld [vmem:[%s255 + $0x1e0] sm:$0xff]
                  %288 = vst [vmem:[%s256 + $0x78] sm:$0xff] %v287
                $region56: #{lm_head_linear_allreduce.1} parent=50 // loop_footer
                  %s254 = sadd.s32 1, %s250
                $region57: #{lm_head_linear_allreduce.1} parent=50 // loop_footer_branch
                  %249 = sbr.rel target = $region53
                $region58: #{lm_head_linear_allreduce.1} parent=50 // loop_exit
                  _
              $region51: #{lm_head_linear_allreduce.1} parent=35 // pred_fallthru
                _
              // Predicated region
              $region59: #{lm_head_linear_allreduce.1} parent=35 // pred_check
                _
              $region60: #{lm_head_linear_allreduce.1} parent=35 // pred_check_branch
                %290 = sbr.rel target = $region62
              $region61: #{lm_head_linear_allreduce.1} parent=35 // pred_region
                _
              $region62: #{lm_head_linear_allreduce.1} parent=35 // pred_fallthru
                _
            $region36: #{lm_head_linear_allreduce.1} parent=31 // pred_fallthru
              _
            // Predicated region
            $region37: #{lm_head_linear_allreduce.1} parent=31 // pred_check
              _
            $region38: #{lm_head_linear_allreduce.1} parent=31 // pred_check_branch
              %204 = sbr.rel target = $region40
            $region39: #{lm_head_linear_allreduce.1} parent=31 // pred_region
              %s206 = ssub.s32 256, 1
              loop: start=0, step=1, limit=1
              $region41: #{lm_head_linear_allreduce.1} parent=39 // loop_pre_header
                _
              $region42: #{lm_head_linear_allreduce.1} parent=39 // loop_header
                %s208 = sphi 0, %s212
                %p209 = scmp.ge.s32.totalorder %s208, 1
                %s213 = sphi %s198, %s198
                %s214 = sphi %s195, %s195
              $region43: #{lm_head_linear_allreduce.1} parent=39 // loop_header_branch
                %211 = sbr.rel (%p209) target = $region47
              $region44: #{lm_head_linear_allreduce.1} parent=39 // loop_body
                %v215 = vld [vmem:[%s213] sm:%s206]
                %216 = vst [vmem:[%s214] sm:%s206] %v215
                %v217 = vld [vmem:[%s213 + $0x20] sm:%s206]
                %218 = vst [vmem:[%s214 + $0x8] sm:%s206] %v217
                %v219 = vld [vmem:[%s213 + $0x40] sm:%s206]
                %220 = vst [vmem:[%s214 + $0x10] sm:%s206] %v219
                %v221 = vld [vmem:[%s213 + $0x60] sm:%s206]
                %222 = vst [vmem:[%s214 + $0x18] sm:%s206] %v221
                %v223 = vld [vmem:[%s213 + $0x80] sm:%s206]
                %224 = vst [vmem:[%s214 + $0x20] sm:%s206] %v223
                %v225 = vld [vmem:[%s213 + $0xa0] sm:%s206]
                %226 = vst [vmem:[%s214 + $0x28] sm:%s206] %v225
                %v227 = vld [vmem:[%s213 + $0xc0] sm:%s206]
                %228 = vst [vmem:[%s214 + $0x30] sm:%s206] %v227
                %v229 = vld [vmem:[%s213 + $0xe0] sm:%s206]
                %230 = vst [vmem:[%s214 + $0x38] sm:%s206] %v229
                %v231 = vld [vmem:[%s213 + $0x100] sm:%s206]
                %232 = vst [vmem:[%s214 + $0x40] sm:%s206] %v231
                %v233 = vld [vmem:[%s213 + $0x120] sm:%s206]
                %234 = vst [vmem:[%s214 + $0x48] sm:%s206] %v233
                %v235 = vld [vmem:[%s213 + $0x140] sm:%s206]
                %236 = vst [vmem:[%s214 + $0x50] sm:%s206] %v235
                %v237 = vld [vmem:[%s213 + $0x160] sm:%s206]
                %238 = vst [vmem:[%s214 + $0x58] sm:%s206] %v237
                %v239 = vld [vmem:[%s213 + $0x180] sm:%s206]
                %240 = vst [vmem:[%s214 + $0x60] sm:%s206] %v239
                %v241 = vld [vmem:[%s213 + $0x1a0] sm:%s206]
                %242 = vst [vmem:[%s214 + $0x68] sm:%s206] %v241
                %v243 = vld [vmem:[%s213 + $0x1c0] sm:%s206]
                %244 = vst [vmem:[%s214 + $0x70] sm:%s206] %v243
                %v245 = vld [vmem:[%s213 + $0x1e0] sm:%s206]
                %246 = vst [vmem:[%s214 + $0x78] sm:%s206] %v245
              $region45: #{lm_head_linear_allreduce.1} parent=39 // loop_footer
                %s212 = sadd.s32 1, %s208
              $region46: #{lm_head_linear_allreduce.1} parent=39 // loop_footer_branch
                %207 = sbr.rel target = $region42
              $region47: #{lm_head_linear_allreduce.1} parent=39 // loop_exit
                _
            $region40: #{lm_head_linear_allreduce.1} parent=31 // pred_fallthru
              _
          $region32: #{lm_head_linear_allreduce.1} parent=27 // pred_fallthru
            _
          %291 = vnop
        $region28: #{lm_head_linear_allreduce.1} parent=19 // pred_fallthru
          _
        // Predicated region
        $region63: #{lm_head_linear_allreduce.1} parent=19 // pred_check
          %p292 = pneg %p119
        $region64: #{lm_head_linear_allreduce.1} parent=19 // pred_check_branch
          %294 = sbr.rel (%p292) target = $region66
        $region65: #{lm_head_linear_allreduce.1} parent=19 // pred_region
          %s295 = smul.u32 2, %s21
          %p296 = scmp.lt.s32.totalorder %s295, 7
          %s297 = scalar_select %p296, %s295, 7
          %s298 = scalar_lea.vmem %s3, %s297
          %s299 = smul.u32 2, %s21
        $region66: #{lm_head_linear_allreduce.1} parent=19 // pred_fallthru
          _
      $region20: #{lm_head_linear_allreduce.1} parent=5 // pred_fallthru
        _
      %p300 = scmp.le.s32.totalorder 1, %s14
      %p301 = scmp.lt.s32.totalorder %s14, 9
      %p302 = pnand %p300, %p301
      %p303 = pneg %p302
      // Predicated region
      $region67: #{lm_head_linear_allreduce.1} parent=5 // pred_check
        _
      $region68: #{lm_head_linear_allreduce.1} parent=5 // pred_check_branch
        %305 = sbr.rel (%p302) target = $region70
      $region69: #{lm_head_linear_allreduce.1} parent=5 // pred_region
        %s306 = ssub.s32 %s14, 1
        %s307 = sand.u32 %s65, 1
        %s308 = sand.u32 %s65, 1
        %s309 = smul.addr %s308, 128
        %s310 = scalar_lea.vmem [#allocation2], %s309
        // Predicated region
        $region71: #{lm_head_linear_allreduce.1} parent=69 // pred_check
          %p311 = pneg %p78
        $region72: #{lm_head_linear_allreduce.1} parent=69 // pred_check_branch
          %313 = sbr.rel (%p311) target = $region74
        $region73: #{lm_head_linear_allreduce.1} parent=69 // pred_region
          _
        $region74: #{lm_head_linear_allreduce.1} parent=69 // pred_fallthru
          _
        // Predicated region
        $region75: #{lm_head_linear_allreduce.1} parent=69 // pred_check
          %p314 = pneg %p99
        $region76: #{lm_head_linear_allreduce.1} parent=69 // pred_check_branch
          %316 = sbr.rel (%p314) target = $region78
        $region77: #{lm_head_linear_allreduce.1} parent=69 // pred_region
          %318 = dma.done [#allocation5], 16
        $region78: #{lm_head_linear_allreduce.1} parent=69 // pred_fallthru
          _
        %319 = sfence
        %p320 = scmp.lt.s32.totalorder %s24, 1
        %s321 = scalar_select %p320, %s24, 1
        %s322 = smul.addr %s321, 4
        %s323 = scalar_lea.vmem %s0, %s322
        %p324 = pneg %p52
        %p325 = pneg %p49
        %s326 = sand.u32 %s65, 1
        %s327 = sand.u32 %s65, 1
        %s328 = smul.addr %s327, 128
        %s329 = scalar_lea.vmem [#allocation2], %s328
        %p330 = pneg %p78
        %p331 = pneg %p75
        %p332 = pneg %p99
        %p333 = pneg %p96
        %s334 = smul.u32 2, %s23
        %p335 = scmp.lt.s32.totalorder %s334, 7
        %s336 = scalar_select %p335, %s334, 7
        %s337 = scalar_lea.vmem %s3, %s336
        %p338 = pneg %p125
        %p339 = pneg %p122
        %p340 = pneg %p153
        %p341 = pneg %p150
        %s342 = sand.u32 %s140, 1
        %s343 = scalar_lea.sflag [#allocation4], %s342
        %s344 = sand.u32 %s140, 1
        %s345 = smul.addr %s344, 8
        %s346 = scalar_lea.vmem [#allocation6], %s345
        %p347 = scmp.lt.s32.totalorder %s24, 1
        %s348 = scalar_select %p347, %s24, 1
        %s349 = smul.addr %s348, 4
        %s350 = scalar_lea.vmem %s0, %s349
        %s351 = smul.u32 2, %s23
        %s352 = smul.u32 2, %s23
        %p353 = scmp.lt.s32.totalorder %s352, 7
        %s354 = scalar_select %p353, %s352, 7
        %s355 = scalar_lea.vmem %s3, %s354
        %s356 = smul.u32 2, %s23
        %s357 = smul.u32 2, %s23
        %v358 = vld [vmem:[%s350] sm:$0xf]
        %v359 = vld [vmem:[%s310] sm:$0xff]
        %v360 = vld [vmem:[%s310 + $0x8] sm:$0xff]
        %v361 = vld [vmem:[%s310 + $0x10] sm:$0xff]
        %v362 = vld [vmem:[%s310 + $0x18] sm:$0xff]
        %v363 = vld [vmem:[%s310 + $0x20] sm:$0xff]
        %v364 = vld [vmem:[%s310 + $0x28] sm:$0xff]
        %v365 = vld [vmem:[%s310 + $0x30] sm:$0xff]
        %v366 = vld [vmem:[%s310 + $0x38] sm:$0xff]
        %v367 = vld [vmem:[%s310 + $0x40] sm:$0xff]
        %v368 = vld [vmem:[%s310 + $0x48] sm:$0xff]
        %v369 = vld [vmem:[%s310 + $0x50] sm:$0xff]
        %v370 = vld [vmem:[%s310 + $0x58] sm:$0xff]
        %v371 = vld [vmem:[%s310 + $0x60] sm:$0xff]
        %v372 = vld [vmem:[%s310 + $0x68] sm:$0xff]
        %v373 = vld [vmem:[%s310 + $0x70] sm:$0xff]
        %v374 = vld [vmem:[%s310 + $0x78] sm:$0xff]
        %v391 = vunpack.c.l.b16 %v359
        %v392 = vunpack.c.h.b16 %v359
        %v393 = vunpack.c.l.b16 %v360
        %v394 = vunpack.c.h.b16 %v360
        %v395 = vunpack.c.l.b16 %v361
        %v396 = vunpack.c.h.b16 %v361
        %v397 = vunpack.c.l.b16 %v362
        %v398 = vunpack.c.h.b16 %v362
        %v399 = vunpack.c.l.b16 %v363
        %v400 = vunpack.c.h.b16 %v363
        %v401 = vunpack.c.l.b16 %v364
        %v402 = vunpack.c.h.b16 %v364
        %v403 = vunpack.c.l.b16 %v365
        %v404 = vunpack.c.h.b16 %v365
        %v405 = vunpack.c.l.b16 %v366
        %v406 = vunpack.c.h.b16 %v366
        %v407 = vunpack.c.l.b16 %v367
        %v408 = vunpack.c.h.b16 %v367
        %v409 = vunpack.c.l.b16 %v368
        %v410 = vunpack.c.h.b16 %v368
        %v411 = vunpack.c.l.b16 %v369
        %v412 = vunpack.c.h.b16 %v369
        %v413 = vunpack.c.l.b16 %v370
        %v414 = vunpack.c.h.b16 %v370
        %v415 = vunpack.c.l.b16 %v371
        %v416 = vunpack.c.h.b16 %v371
        %v417 = vunpack.c.l.b16 %v372
        %v418 = vunpack.c.h.b16 %v372
        %v419 = vunpack.c.l.b16 %v373
        %v420 = vunpack.c.h.b16 %v373
        %v421 = vunpack.c.l.b16 %v374
        %v422 = vunpack.c.h.b16 %v374
        %v423 = vpack.c.b16 %v393, %v391
        %v424 = vpack.c.b16 %v394, %v392
        %v425 = vpack.c.b16 %v397, %v395
        %v426 = vpack.c.b16 %v398, %v396
        %v427 = vpack.c.b16 %v401, %v399
        %v428 = vpack.c.b16 %v402, %v400
        %v429 = vpack.c.b16 %v405, %v403
        %v430 = vpack.c.b16 %v406, %v404
        %v431 = vpack.c.b16 %v409, %v407
        %v432 = vpack.c.b16 %v410, %v408
        %v433 = vpack.c.b16 %v413, %v411
        %v434 = vpack.c.b16 %v414, %v412
        %v435 = vpack.c.b16 %v417, %v415
        %v436 = vpack.c.b16 %v418, %v416
        %v437 = vpack.c.b16 %v421, %v419
        %v438 = vpack.c.b16 %v422, %v420
        %455 = vmatpush.bf16.msra.mxu0 %v437
        %456 = vmatpush.bf16.msra.mxu0 %v435
        %457 = vmatpush.bf16.msra.mxu0 %v433
        %458 = vmatpush.bf16.msra.mxu0 %v431
        %459 = vmatpush.bf16.msra.mxu0 %v429
        %460 = vmatpush.bf16.msra.mxu0 %v427
        %461 = vmatpush.bf16.msra.mxu0 %v425
        %462 = vmatpush.bf16.msra.mxu0 %v423
        %463 = vmatmul.bf16.gmra.mxu0 %v358
        %v464 = vpop.f32.mrf.mxu0
        %v465 = vadd.f32 0.0, %v464
        %v466 = vpop.f32.mrf.mxu0
        %467 = vdwg.mxu0
        %468 = vmatpush.bf16.msra.mxu0 %v438
        %469 = vmatpush.bf16.msra.mxu0 %v436
        %470 = vmatpush.bf16.msra.mxu0 %v434
        %471 = vmatpush.bf16.msra.mxu0 %v432
        %472 = vmatpush.bf16.msra.mxu0 %v430
        %473 = vmatpush.bf16.msra.mxu0 %v428
        %474 = vmatpush.bf16.msra.mxu0 %v426
        %475 = vmatpush.bf16.msra.mxu0 %v424
        %476 = vmatmul.bf16.gmra.mxu0 %v358
        %v477 = vpop.f32.mrf.mxu0
        %v478 = vadd.f32 0.0, %v477
        %v479 = vpop.f32.mrf.mxu0
        %480 = vdwg.mxu0
        %s481 = sld [smem:[#allocation3 + $0x1]]
        %v482 = vstv %s481
        %v483 = vmul.f32 %v465, %v482
        %v484 = vmul.f32 %v478, %v482
        %v485 = vpack.c.bf16 %v484, %v483
        %v486 = vld [vmem:[%s355] sm:$0x3]
        %488 = vst [vmem:[#allocation1] ss:$9 sm:$0xff] %v486
        %v489 = vld [vmem:[#allocation1] sm:$0xff]
        %v490 = vld [vmem:[#allocation1 + $0x9] sm:$0xff]
        %v491 = vpack.i.b16 %v489, %v489
        %v493 = vperm.slane %v491, 0
        %v494 = vpack.i.b16 %v490, %v490
        %v496 = vperm.slane %v494, 0
        %v497 = vunpack.c.l.bf16 %v485
        %v498 = vunpack.c.h.bf16 %v485
        %v499 = vunpack.c.l.bf16 %v493
        %v500 = vunpack.c.l.bf16 %v496
        %v501 = vadd.f32 %v497, %v499
        %v502 = vadd.f32 %v498, %v500
        %v503 = vpack.c.bf16 %v502, %v501
        %504 = vst [vmem:[%s346] sm:$0xff] %v503
        %s505 = sand.u32 %s140, 1
        %s506 = scalar_lea.sflag [#allocation4], %s505
        %s507 = sand.u32 %s140, 1
        %s508 = smul.addr %s507, 8
        %s509 = scalar_lea.vmem [#allocation6], %s508
        // Predicated region
        $region79: #{lm_head_linear_allreduce.1} parent=69 // pred_check
          %p510 = pneg %p150
        $region80: #{lm_head_linear_allreduce.1} parent=69 // pred_check_branch
          %512 = sbr.rel (%p510) target = $region82
        $region81: #{lm_head_linear_allreduce.1} parent=69 // pred_region
          %s513 = smul.u32 2, %s23
          %515 = vsyncadd %s506, 0
          %s516 = smul.addr %s24, 8
          %s517 = sadd.s32 %s513, %s516
          %s518 = smul.addr %s517, 4
          %s519 = scalar_lea.hbm %s4, %s518
          %s521 = sshll.u32 %s509, 4
          %s522 = int_to_ptr.vmem [resolvable:$true] %s521
          %s523 = sshll.u32 %s519, 4
          %s524 = int_to_ptr.hbm [resolvable:$true] %s523
          %526 = dma.vmem_to_hbm [thread:$0]  %s522, 128, %s524, %s506
        $region82: #{lm_head_linear_allreduce.1} parent=69 // pred_fallthru
          _
      $region70: #{lm_head_linear_allreduce.1} parent=5 // pred_fallthru
        _
      %p527 = scmp.le.s32.totalorder 2, %s14
      // Predicated region
      $region83: #{lm_head_linear_allreduce.1} parent=5 // pred_check
        %p528 = pneg %p527
      $region84: #{lm_head_linear_allreduce.1} parent=5 // pred_check_branch
        %530 = sbr.rel (%p528) target = $region86
      $region85: #{lm_head_linear_allreduce.1} parent=5 // pred_region
        %s531 = ssub.s32 %s14, 2
        // Predicated region
        $region87: #{lm_head_linear_allreduce.1} parent=85 // pred_check
          %p532 = pneg %p156
        $region88: #{lm_head_linear_allreduce.1} parent=85 // pred_check_branch
          %534 = sbr.rel (%p532) target = $region90
        $region89: #{lm_head_linear_allreduce.1} parent=85 // pred_region
          %s535 = sand.u32 %s141, 1
          %s536 = scalar_lea.sflag [#allocation4], %s535
          %s537 = sand.u32 %s141, 1
          %s538 = smul.addr %s537, 8
          %s539 = scalar_lea.vmem [#allocation6], %s538
          %541 = dma.done %s536, 128
        $region90: #{lm_head_linear_allreduce.1} parent=85 // pred_fallthru
          _
      $region86: #{lm_head_linear_allreduce.1} parent=5 // pred_fallthru
        _
    $region6: #{lm_head_linear_allreduce.1} parent=1 // loop_footer
      %s18 = sadd.s32 1, %s14
    $region7: #{lm_head_linear_allreduce.1} parent=1 // loop_footer_branch
      %13 = sbr.rel target = $region3
    $region8: #{lm_head_linear_allreduce.1} parent=1 // loop_exit
      _
    %542 = vsyncpa [#allocation4], 1
    %s543 = scalar_lea.sflag [#allocation4], 1
    %544 = vsyncpa %s543, 1
    %545 = vsyncpa [#allocation5], 1
    %s546 = scalar_lea.sflag [#allocation5], 1
    %547 = vsyncpa %s546, 1

</llo_original>
